<compile_context>
chip_gen: v7x
topology: tpu7x:2x2x1
jax: 0.10.0
libtpu: 0.0.40
codegen_flags: <defaults>
</compile_context>

<pallas_src>
import functools
import math

import jax
import jax.numpy as jnp
import numpy as np
from jax.experimental import pallas as pl
from jax.experimental.pallas import tpu as pltpu


# ------------------------------ fused kernel -------------------------------- #

def _wide_cnn_fused_kernel(*refs, n_conv, n_fc, K, H, W, act):
    """One batch block (BLK samples) per grid step.

    refs = [x_ref,
            conv_w_0, conv_b_0, ..., conv_w_{n_conv-1}, conv_b_{n_conv-1},
            fc_w_0,   fc_b_0,   ..., fc_w_{n_fc-1},     fc_b_{n_fc-1},
            out_ref,
            pad_ref, flat_ref]                               (scratch, VMEM)

    x_ref    : (1, BLK, H, W)               f32   (Cin == 1)
    conv_w_l : (K, (W+2p)*Cin_l, W*Cout_l)  f32   banded row-shift weights
    conv_b_l : (1, W*Cout_l)                f32   bias tiled over j
    fc_w_l   : (F_l, O_l)                   f32   (last O_l padded to 128*k)
    fc_b_l   : (1, O_l)                     f32
    out_ref  : (1, BLK, O_pad)              f32
    pad_ref  : (BLK, H+2p, (W+2p)*C_max)    f32   padded activations
    flat_ref : (BLK, H*W*C_last)            f32   lane-dense flatten buffer
    """
    x_ref = refs[0]
    p = 1
    conv_refs = refs[p:p + 2 * n_conv]; p += 2 * n_conv
    fc_refs = refs[p:p + 2 * n_fc]; p += 2 * n_fc
    out_ref = refs[p]; p += 1
    pad_ref, flat_ref = refs[p], refs[p + 1]

    pad = K // 2
    Wp = W + 2 * pad
    BLK = x_ref.shape[1]

    def apply_act(v):
        if act == 'Tanh':
            return jnp.tanh(v)
        return jnp.maximum(v, 0.01 * v)     # LeakyReLU(0.01): single VPU max

    # ----------------------------- conv block ------------------------------ #
    # Activations live in a channels-fastest 2-D layout: (BLK, H, W*Cin).
    h2d = x_ref[0]                                         # (BLK, H, W), Cin=1
    for l in range(n_conv):
        w_ref, b_ref = conv_refs[2 * l], conv_refs[2 * l + 1]
        cin = w_ref.shape[1] // Wp
        n_out = w_ref.shape[2]                             # = W * Cout
        wl = Wp * cin                                      # used lane width

        # Zero ONLY the halo ring for this layer's used lane width (the
        # interior is fully overwritten right below).
        if pad > 0:
            zrow = jnp.zeros((BLK, pad, wl), jnp.float32)
            pad_ref[:, :pad, :wl] = zrow                   # top pad rows
            pad_ref[:, pad + H:, :wl] = zrow               # bottom pad rows
            zcol = jnp.zeros((BLK, H, pad * cin), jnp.float32)
            pad_ref[:, pad:pad + H, :pad * cin] = zcol            # left halo
            pad_ref[:, pad:pad + H, (W + pad) * cin:wl] = zcol    # right halo

        # SAME padding: one lane-contiguous interior write.
        pad_ref[:, pad:pad + H, pad * cin:(W + pad) * cin] = h2d

        # Conv = K row-shifted matmuls against banded weights (built offline):
        #   out[b,i, j*Cout+o] = sum_di pad2d[b, i+di, :] @ Wband[di]
        # Each slab read is lane-dense; there is no per-tap im2col gather.
        acc = None
        for di in range(K):
            slab = pad_ref[:, di:di + H, :wl].reshape(BLK * H, wl)
            part = jnp.dot(slab, w_ref[di], preferred_element_type=jnp.float32)
            acc = part if acc is None else acc + part
        h2d = apply_act(acc + b_ref[...]).reshape(BLK, H, n_out)

    # ------------------------------- flatten -------------------------------- #
    # (H, W, C) flatten order, matching the offline row permutation of the
    # first FC weight.  H chunk stores of W*Cout lanes each (lane-dense),
    # instead of H*W stores of Cout lanes.
    n_last = h2d.shape[-1]                                 # = W * Cout_last
    for i in range(H):
        flat_ref[:, i * n_last:(i + 1) * n_last] = h2d[:, i, :]
    z = flat_ref[...]                                      # (BLK, H*W*Cout)

    # ------------------------------- FC block ------------------------------- #
    for l in range(n_fc):
        w_ref, b_ref = fc_refs[2 * l], fc_refs[2 * l + 1]
        y = jnp.dot(z, w_ref[...], preferred_element_type=jnp.float32) + b_ref[...]
        if l == n_fc - 1:
            z = math.pi * jnp.tanh(y)      # SequentialNN: pi * tanh(last layer)
        else:
            z = apply_act(y)

    # Last FC output dim is zero-padded to a multiple of 128 offline, so this
    # is an unmasked, lane-dense store (the wrapper slices back to o_final).
    out_ref[0] = z


# ------------------------- offline parameter prep --------------------------- #

def prepare_params(params, *, H, W, lane_pad=128):
    """One-time re-layout so the per-call forward path has no layout plumbing.

    * conv OIHW -> K banded row-shift matrices ((W+2p)*Cin, W*Cout), one per
      vertical tap di, stacked as (K, (W+2p)*Cin, W*Cout); bias tiled over j.
    * FC (out,in) -> (in,out); first FC weight rows permuted from PyTorch's
      (C,H,W) flatten order to the kernel's (H,W,C) order; last FC weight and
      bias zero-padded to a multiple of `lane_pad` output lanes.
    """
    K = params['conv'][0][0].shape[-1]
    assert K % 2 == 1, "padding='same' with even kernel_size needs asymmetric pad"
    # TODO(synk): even kernel_size (asymmetric 'same' padding) not implemented.
    pad = K // 2
    Wp = W + 2 * pad

    conv_p = []
    for (w_oihw, b) in params['conv']:
        w_np = np.asarray(w_oihw, dtype=np.float32)        # (Cout, Cin, K, K)
        c_out, c_in = w_np.shape[0], w_np.shape[1]
        wband = np.zeros((K, Wp * c_in, W * c_out), np.float32)
        for di in range(K):
            for dj in range(K):
                tap = w_np[:, :, di, dj].T                 # (Cin, Cout)
                for j in range(W):
                    r0 = (j + dj) * c_in
                    c0 = j * c_out
                    wband[di, r0:r0 + c_in, c0:c0 + c_out] = tap
        b_np = np.asarray(b, dtype=np.float32)
        b_tiled = np.tile(b_np, W).reshape(1, W * c_out)   # [j*Cout + o] = b[o]
        conv_p.append((jnp.asarray(wband), jnp.asarray(b_tiled)))
    c_out_conv = params['conv'][-1][0].shape[0]

    fc_p = []
    n_fc = len(params['fc'])
    o_final = params['fc'][-1][0].shape[0]
    for li, (w_oi, b) in enumerate(params['fc']):
        w_np = np.asarray(w_oi, dtype=np.float32)          # (out, in)
        o, f = w_np.shape
        w_io = w_np.T                                      # (in, out)
        b_row = np.asarray(b, dtype=np.float32).reshape(1, o)
        if li == 0:
            # PyTorch flattens the conv output in (C,H,W) order; the kernel
            # flattens in (H,W,C) order -> permute the rows once here.
            assert f == c_out_conv * H * W
            w_io = (w_io.reshape(c_out_conv, H, W, o)
                        .transpose(1, 2, 0, 3).reshape(f, o))
        if li == n_fc - 1:
            o_pad = ((o + lane_pad - 1) // lane_pad) * lane_pad
            if o_pad != o:     # zero-padded lanes -> pi*tanh(0) = 0, sliced off
                w_io = np.pad(w_io, ((0, 0), (0, o_pad - o)))
                b_row = np.pad(b_row, ((0, 0), (0, o_pad - o)))
        fc_p.append((jnp.asarray(w_io), jnp.asarray(b_row)))

    meta = {'H': H, 'W': W, 'K': K, 'o_final': o_final}
    return conv_p, fc_p, meta


# ------------------------------ forward wrapper ------------------------------ #

def wide_cnn_forward(x_nchw, prepared, *, activation='Tanh', blk=None):
    """Fused Pallas implementation of WideCNN.forward.  x_nchw: (B, 1, H, W)."""
    if activation not in ('Tanh', 'LeakyReLU'):
        raise ValueError('Invalid activation function')
    # TODO(synk): SequentialNN norm=True (LayerNorm) path not implemented.

    conv_p, fc_p, meta = prepared
    H, W, K, o_final = meta['H'], meta['W'], meta['K'], meta['o_final']
    pad = K // 2
    Wp = W + 2 * pad
    B = x_nchw.shape[0]
    assert x_nchw.shape[1] == 1 and x_nchw.shape[2] == H and x_nchw.shape[3] == W
    n_conv, n_fc = len(conv_p), len(fc_p)
    c_max = max(w.shape[1] // Wp for (w, _) in conv_p)
    n_last = conv_p[-1][0].shape[2]             # = W * Cout_last
    o_pad = fc_p[-1][0].shape[-1]               # last FC out dim (128-padded)

    # Batch block: large enough to amortize per-step overhead / grow matmul M,
    # but keep >= 2 grid steps when B >= 2 (v7x has 2 TensorCores).
    if blk is None:
        blk = 1 if B < 2 else max(1, min(8, B // 2))
    blk = max(1, min(blk, B))
    nb = pl.cdiv(B, blk)
    B_pad = nb * blk

    # (B,1,H,W) -> (nb, BLK, H, W): metadata-only reshapes (Cin == 1).
    x = x_nchw.reshape(B, H, W).astype(jnp.float32)
    if B_pad != B:
        x = jnp.concatenate([x, jnp.zeros((B_pad - B, H, W), jnp.float32)], 0)
    x = x.reshape(nb, blk, H, W)

    args = [x]
    in_specs = [pl.BlockSpec((1, blk, H, W), lambda g: (g, 0, 0, 0))]

    def add_param(arr):
        # Grid-invariant params; tiny here, so default double-buffering is
        # irrelevant (single-buffering / persistent scratch only pays for much
        # larger configs, esp. on v7x's 64 MiB VMEM).
        args.append(arr)
        in_specs.append(pl.BlockSpec(arr.shape, lambda g, _n=arr.ndim: (0,) * _n))

    for w, bias in conv_p + fc_p:
        add_param(w)
        add_param(bias)

    kern = functools.partial(_wide_cnn_fused_kernel, n_conv=n_conv, n_fc=n_fc,
                             K=K, H=H, W=W, act=activation)

    out = pl.pallas_call(
        kern,
        out_shape=jax.ShapeDtypeStruct((nb, blk, o_pad), jnp.float32),
        grid=(nb,),
        in_specs=in_specs,
        out_specs=pl.BlockSpec((1, blk, o_pad), lambda g: (g, 0, 0)),
        scratch_shapes=[
            pltpu.VMEM((blk, H + 2 * pad, Wp * c_max), jnp.float32),
            pltpu.VMEM((blk, H * n_last), jnp.float32),
        ],
        compiler_params=pltpu.CompilerParams(
            dimension_semantics=("parallel",),
            vmem_limit_bytes=32 * 1024 * 1024),
    )(*args)
    return out.reshape(B_pad, o_pad)[:B, :o_final]


# ---------------------------- pure-JAX reference ----------------------------- #

def reference_forward(x_nchw, params, activation='Tanh'):
    def act(v, name):
        return jnp.tanh(v) if name == 'Tanh' else jnp.where(v > 0, v, 0.01 * v)

    h = x_nchw.astype(jnp.float32)
    for (w, b) in params['conv']:
        c_out, _, k, _ = w.shape
        pad = k // 2
        hp = jnp.pad(h, ((0, 0), (0, 0), (pad, pad), (pad, pad)))
        bsz, _, hh, ww = h.shape
        out = jnp.zeros((bsz, c_out, hh, ww), jnp.float32)
        for di in range(k):
            for dj in range(k):
                patch = hp[:, :, di:di + hh, dj:dj + ww]
                out = out + jnp.einsum('bchw,oc->bohw', patch, w[:, :, di, dj])
        h = act(out + b.reshape(1, c_out, 1, 1), activation)
    bsz = h.shape[0]
    out = h.reshape(bsz, -1)                  # PyTorch (C, H, W) flatten order
    fc = params['fc']
    for li, (w, b) in enumerate(fc):
        y = out @ w.T + b
        out = math.pi * jnp.tanh(y) if li == len(fc) - 1 else act(y, activation)
    return out


# -------------------------------- parameters --------------------------------- #

def init_wide_cnn_params(key, *, spatial_hw, num_conv_layers, num_layers,
                         kernel_size, output_size, hidden_size):
    H, W = spatial_hw
    input_size = H * W
    keys = iter(jax.random.split(key, 4 * (num_conv_layers + num_layers) + 8))

    conv = []
    cin = 1
    for _ in range(num_conv_layers):
        w = 0.1 * jax.random.normal(
            next(keys), (output_size, cin, kernel_size, kernel_size), jnp.float32)
        b = 0.1 * jax.random.normal(next(keys), (output_size,), jnp.float32)
        conv.append((w, b))
        cin = output_size

    in_f = output_size * input_size
    if num_layers > 1:
        dims = [in_f] + [hidden_size] * (num_layers - 1) + [output_size]
    else:
        dims = [in_f, output_size]
    fc = []
    for i in range(len(dims) - 1):
        w = 0.1 * jax.random.normal(next(keys), (dims[i + 1], dims[i]), jnp.float32)
        b = 0.1 * jax.random.normal(next(keys), (dims[i + 1],), jnp.float32)
        fc.append((w, b))
    return {'conv': conv, 'fc': fc}


# ----------------------------------- main ------------------------------------ #

if __name__ == "__main__":
    key = jax.random.PRNGKey(0)
    kp, kx, kx2 = jax.random.split(key, 3)

    # Config consistent with the module:
    #   input_size = H*W = 64, output_size = 8, kernel_size = 3,
    #   num_conv_layers = 2, num_layers = 3, hidden_size = 32, norm=False
    B, H, W = 8, 8, 8
    num_conv_layers, num_layers = 2, 3
    kernel_size, output_size, hidden_size = 3, 8, 32

    params = init_wide_cnn_params(
        kp, spatial_hw=(H, W), num_conv_layers=num_conv_layers,
        num_layers=num_layers, kernel_size=kernel_size,
        output_size=output_size, hidden_size=hidden_size)

    # One-time offline weight re-layout (banded conv weights, FC transposes,
    # flatten-order permutation, 128-lane output padding).
    prepared = prepare_params(params, H=H, W=W)

    # Test 1: Tanh, B=8 -> BLK=4, grid=(2,) (two steps -> both v7x cores busy).
    x = jax.random.normal(kx, (B, 1, H, W), jnp.float32)   # NCHW like PyTorch
    out = jax.block_until_ready(wide_cnn_forward(x, prepared, activation='Tanh'))
    ref = reference_forward(x, params, activation='Tanh')
    assert out.shape == (B, output_size), out.shape
    # f32 matmuls throughout -> tight tolerance.
    assert jnp.allclose(out, ref, atol=1e-4, rtol=1e-4), (out, ref)

    # Test 2: LeakyReLU path + batch not divisible by the block size
    # (exercises the batch-padding path).
    x2 = jax.random.normal(kx2, (6, 1, H, W), jnp.float32)
    out2 = jax.block_until_ready(
        wide_cnn_forward(x2, prepared, activation='LeakyReLU', blk=4))
    ref2 = reference_forward(x2, params, activation='LeakyReLU')
    assert out2.shape == (6, output_size), out2.shape
    assert jnp.allclose(out2, ref2, atol=1e-4, rtol=1e-4), (out2, ref2)

    print("KERNEL_OK")
</pallas_src>

<mosaic_0001>
module attributes {stable_mosaic.version = 11 : i64} {
  func.func @_wide_cnn_fused_kernel(%arg0: i32, %arg1: memref<1x4x8x8xf32, #tpu.memory_space<vmem>>, %arg2: memref<3x10x64xf32, #tpu.memory_space<vmem>>, %arg3: memref<1x64xf32, #tpu.memory_space<vmem>>, %arg4: memref<3x80x64xf32, #tpu.memory_space<vmem>>, %arg5: memref<1x64xf32, #tpu.memory_space<vmem>>, %arg6: memref<512x32xf32, #tpu.memory_space<vmem>>, %arg7: memref<1x32xf32, #tpu.memory_space<vmem>>, %arg8: memref<32x32xf32, #tpu.memory_space<vmem>>, %arg9: memref<1x32xf32, #tpu.memory_space<vmem>>, %arg10: memref<32x128xf32, #tpu.memory_space<vmem>>, %arg11: memref<1x128xf32, #tpu.memory_space<vmem>>, %arg12: memref<1x4x128xf32, #tpu.memory_space<vmem>>, %arg13: memref<4x10x80xf32, #tpu.memory_space<vmem>>, %arg14: memref<4x512xf32, #tpu.memory_space<vmem>>) attributes {dimension_semantics = [#tpu.dimension_semantics<parallel>], iteration_bounds = array<i64: 2>, scalar_prefetch = 0 : i64, scratch_operands = 2 : i64, tpu.core_type = #tpu.core_type<tc>, window_params = [{transform_indices = @transform_0, window_bounds = array<i64: 1, 4, 8, 8>}, {pipeline_mode = #tpu.pipeline_mode<synchronous>, transform_indices = @transform_1, window_bounds = array<i64: 3, 10, 64>}, {pipeline_mode = #tpu.pipeline_mode<synchronous>, transform_indices = @transform_2, window_bounds = array<i64: 1, 64>}, {pipeline_mode = #tpu.pipeline_mode<synchronous>, transform_indices = @transform_3, window_bounds = array<i64: 3, 80, 64>}, {pipeline_mode = #tpu.pipeline_mode<synchronous>, transform_indices = @transform_4, window_bounds = array<i64: 1, 64>}, {pipeline_mode = #tpu.pipeline_mode<synchronous>, transform_indices = @transform_5, window_bounds = array<i64: 512, 32>}, {pipeline_mode = #tpu.pipeline_mode<synchronous>, transform_indices = @transform_6, window_bounds = array<i64: 1, 32>}, {pipeline_mode = #tpu.pipeline_mode<synchronous>, transform_indices = @transform_7, window_bounds = array<i64: 32, 32>}, {pipeline_mode = #tpu.pipeline_mode<synchronous>, transform_indices = @transform_8, window_bounds = array<i64: 1, 32>}, {pipeline_mode = #tpu.pipeline_mode<synchronous>, transform_indices = @transform_9, window_bounds = array<i64: 32, 128>}, {pipeline_mode = #tpu.pipeline_mode<synchronous>, transform_indices = @transform_10, window_bounds = array<i64: 1, 128>}, {transform_indices = @transform_11, window_bounds = array<i64: 1, 4, 128>}]} {
    %c0 = arith.constant 0 : index
    %c0_0 = arith.constant 0 : index
    %c0_1 = arith.constant 0 : index
    %c0_2 = arith.constant 0 : index
    %0 = vector.load %arg1[%c0, %c0_0, %c0_1, %c0_2] : memref<1x4x8x8xf32, #tpu.memory_space<vmem>>, vector<1x4x8x8xf32>
    %1 = vector.shape_cast %0 : vector<1x4x8x8xf32> to vector<4x8x8xf32>
    %cst = arith.constant 0.000000e+00 : f32
    %2 = vector.broadcast %cst : f32 to vector<4x1x10xf32>
    %c0_3 = arith.constant 0 : index
    %c0_4 = arith.constant 0 : index
    %c0_5 = arith.constant 0 : index
    %3 = vector.load %arg13[%c0_3, %c0_4, %c0_5] : memref<4x10x80xf32, #tpu.memory_space<vmem>>, vector<4x1x10xf32>
    tpu.vector_store %arg13[%c0_3, %c0_4, %c0_5], %2 {strides = array<i32>} : memref<4x10x80xf32, #tpu.memory_space<vmem>>, vector<4x1x10xf32>,
    %c0_6 = arith.constant 0 : index
    %c9 = arith.constant 9 : index
    %c0_7 = arith.constant 0 : index
    %4 = vector.load %arg13[%c0_6, %c9, %c0_7] : memref<4x10x80xf32, #tpu.memory_space<vmem>>, vector<4x1x10xf32>
    tpu.vector_store %arg13[%c0_6, %c9, %c0_7], %2 {strides = array<i32>} : memref<4x10x80xf32, #tpu.memory_space<vmem>>, vector<4x1x10xf32>,
    %cst_8 = arith.constant 0.000000e+00 : f32
    %5 = vector.broadcast %cst_8 : f32 to vector<4x8x1xf32>
    %c0_9 = arith.constant 0 : index
    %c1 = arith.constant 1 : index
    %c0_10 = arith.constant 0 : index
    %6 = vector.load %arg13[%c0_9, %c1, %c0_10] : memref<4x10x80xf32, #tpu.memory_space<vmem>>, vector<4x8x1xf32>
    tpu.vector_store %arg13[%c0_9, %c1, %c0_10], %5 {strides = array<i32>} : memref<4x10x80xf32, #tpu.memory_space<vmem>>, vector<4x8x1xf32>,
    %c0_11 = arith.constant 0 : index
    %c1_12 = arith.constant 1 : index
    %c9_13 = arith.constant 9 : index
    %7 = vector.load %arg13[%c0_11, %c1_12, %c9_13] : memref<4x10x80xf32, #tpu.memory_space<vmem>>, vector<4x8x1xf32>
    tpu.vector_store %arg13[%c0_11, %c1_12, %c9_13], %5 {strides = array<i32>} : memref<4x10x80xf32, #tpu.memory_space<vmem>>, vector<4x8x1xf32>,
    %c0_14 = arith.constant 0 : index
    %c1_15 = arith.constant 1 : index
    %c1_16 = arith.constant 1 : index
    %8 = vector.load %arg13[%c0_14, %c1_15, %c1_16] : memref<4x10x80xf32, #tpu.memory_space<vmem>>, vector<4x8x8xf32>
    tpu.vector_store %arg13[%c0_14, %c1_15, %c1_16], %1 {strides = array<i32>} : memref<4x10x80xf32, #tpu.memory_space<vmem>>, vector<4x8x8xf32>,
    %c0_17 = arith.constant 0 : index
    %c0_18 = arith.constant 0 : index
    %c0_19 = arith.constant 0 : index
    %9 = vector.load %arg13[%c0_17, %c0_18, %c0_19] : memref<4x10x80xf32, #tpu.memory_space<vmem>>, vector<4x8x10xf32>
    %10 = vector.shape_cast %9 : vector<4x8x10xf32> to vector<32x10xf32>
    %c0_20 = arith.constant 0 : index
    %c0_21 = arith.constant 0 : index
    %c0_22 = arith.constant 0 : index
    %11 = vector.load %arg2[%c0_20, %c0_21, %c0_22] : memref<3x10x64xf32, #tpu.memory_space<vmem>>, vector<1x10x64xf32>
    %12 = vector.shape_cast %11 : vector<1x10x64xf32> to vector<10x64xf32>
    %cst_23 = arith.constant dense<0.000000e+00> : vector<32x64xf32>
    %13 = tpu.matmul %10, %12, %cst_23 {dimension_numbers = #tpu.dot_dimension_numbers<[1], [0], [0], [1], [0, 0, 1, 1], [], []>} : vector<32x10xf32>, vector<10x64xf32>, vector<32x64xf32> -> vector<32x64xf32>
    %c0_24 = arith.constant 0 : index
    %c1_25 = arith.constant 1 : index
    %c0_26 = arith.constant 0 : index
    %14 = vector.load %arg13[%c0_24, %c1_25, %c0_26] : memref<4x10x80xf32, #tpu.memory_space<vmem>>, vector<4x8x10xf32>
    %15 = vector.shape_cast %14 : vector<4x8x10xf32> to vector<32x10xf32>
    %c1_27 = arith.constant 1 : index
    %c0_28 = arith.constant 0 : index
    %c0_29 = arith.constant 0 : index
    %16 = vector.load %arg2[%c1_27, %c0_28, %c0_29] : memref<3x10x64xf32, #tpu.memory_space<vmem>>, vector<1x10x64xf32>
    %17 = vector.shape_cast %16 : vector<1x10x64xf32> to vector<10x64xf32>
    %cst_30 = arith.constant dense<0.000000e+00> : vector<32x64xf32>
    %18 = tpu.matmul %15, %17, %cst_30 {dimension_numbers = #tpu.dot_dimension_numbers<[1], [0], [0], [1], [0, 0, 1, 1], [], []>} : vector<32x10xf32>, vector<10x64xf32>, vector<32x64xf32> -> vector<32x64xf32>
    %19 = arith.addf %13, %18 : vector<32x64xf32>
    %c0_31 = arith.constant 0 : index
    %c2 = arith.constant 2 : index
    %c0_32 = arith.constant 0 : index
    %20 = vector.load %arg13[%c0_31, %c2, %c0_32] : memref<4x10x80xf32, #tpu.memory_space<vmem>>, vector<4x8x10xf32>
    %21 = vector.shape_cast %20 : vector<4x8x10xf32> to vector<32x10xf32>
    %c2_33 = arith.constant 2 : index
    %c0_34 = arith.constant 0 : index
    %c0_35 = arith.constant 0 : index
    %22 = vector.load %arg2[%c2_33, %c0_34, %c0_35] : memref<3x10x64xf32, #tpu.memory_space<vmem>>, vector<1x10x64xf32>
    %23 = vector.shape_cast %22 : vector<1x10x64xf32> to vector<10x64xf32>
    %cst_36 = arith.constant dense<0.000000e+00> : vector<32x64xf32>
    %24 = tpu.matmul %21, %23, %cst_36 {dimension_numbers = #tpu.dot_dimension_numbers<[1], [0], [0], [1], [0, 0, 1, 1], [], []>} : vector<32x10xf32>, vector<10x64xf32>, vector<32x64xf32> -> vector<32x64xf32>
    %25 = arith.addf %19, %24 : vector<32x64xf32>
    %c0_37 = arith.constant 0 : index
    %c0_38 = arith.constant 0 : index
    %26 = vector.load %arg3[%c0_37, %c0_38] : memref<1x64xf32, #tpu.memory_space<vmem>>, vector<1x64xf32>
    %27 = vector.broadcast %26 : vector<1x64xf32> to vector<32x64xf32>
    %28 = arith.addf %25, %27 : vector<32x64xf32>
    %29 = math.tanh %28 : vector<32x64xf32>
    %30 = vector.shape_cast %29 : vector<32x64xf32> to vector<4x8x64xf32>
    %cst_39 = arith.constant 0.000000e+00 : f32
    %31 = vector.broadcast %cst_39 : f32 to vector<4x1x80xf32>
    %c0_40 = arith.constant 0 : index
    %c0_41 = arith.constant 0 : index
    %c0_42 = arith.constant 0 : index
    %32 = vector.load %arg13[%c0_40, %c0_41, %c0_42] : memref<4x10x80xf32, #tpu.memory_space<vmem>>, vector<4x1x80xf32>
    tpu.vector_store %arg13[%c0_40, %c0_41, %c0_42], %31 {strides = array<i32>} : memref<4x10x80xf32, #tpu.memory_space<vmem>>, vector<4x1x80xf32>,
    %c0_43 = arith.constant 0 : index
    %c9_44 = arith.constant 9 : index
    %c0_45 = arith.constant 0 : index
    %33 = vector.load %arg13[%c0_43, %c9_44, %c0_45] : memref<4x10x80xf32, #tpu.memory_space<vmem>>, vector<4x1x80xf32>
    tpu.vector_store %arg13[%c0_43, %c9_44, %c0_45], %31 {strides = array<i32>} : memref<4x10x80xf32, #tpu.memory_space<vmem>>, vector<4x1x80xf32>,
    %cst_46 = arith.constant 0.000000e+00 : f32
    %34 = vector.broadcast %cst_46 : f32 to vector<4x8x8xf32>
    %c0_47 = arith.constant 0 : index
    %c1_48 = arith.constant 1 : index
    %c0_49 = arith.constant 0 : index
    %35 = vector.load %arg13[%c0_47, %c1_48, %c0_49] : memref<4x10x80xf32, #tpu.memory_space<vmem>>, vector<4x8x8xf32>
    tpu.vector_store %arg13[%c0_47, %c1_48, %c0_49], %34 {strides = array<i32>} : memref<4x10x80xf32, #tpu.memory_space<vmem>>, vector<4x8x8xf32>,
    %c0_50 = arith.constant 0 : index
    %c1_51 = arith.constant 1 : index
    %c72 = arith.constant 72 : index
    %36 = vector.load %arg13[%c0_50, %c1_51, %c72] : memref<4x10x80xf32, #tpu.memory_space<vmem>>, vector<4x8x8xf32>
    tpu.vector_store %arg13[%c0_50, %c1_51, %c72], %34 {strides = array<i32>} : memref<4x10x80xf32, #tpu.memory_space<vmem>>, vector<4x8x8xf32>,
    %c0_52 = arith.constant 0 : index
    %c1_53 = arith.constant 1 : index
    %c8 = arith.constant 8 : index
    %37 = vector.load %arg13[%c0_52, %c1_53, %c8] : memref<4x10x80xf32, #tpu.memory_space<vmem>>, vector<4x8x64xf32>
    tpu.vector_store %arg13[%c0_52, %c1_53, %c8], %30 {strides = array<i32>} : memref<4x10x80xf32, #tpu.memory_space<vmem>>, vector<4x8x64xf32>,
    %c0_54 = arith.constant 0 : index
    %c0_55 = arith.constant 0 : index
    %c0_56 = arith.constant 0 : index
    %38 = vector.load %arg13[%c0_54, %c0_55, %c0_56] : memref<4x10x80xf32, #tpu.memory_space<vmem>>, vector<4x8x80xf32>
    %39 = vector.shape_cast %38 : vector<4x8x80xf32> to vector<32x80xf32>
    %c0_57 = arith.constant 0 : index
    %c0_58 = arith.constant 0 : index
    %c0_59 = arith.constant 0 : index
    %40 = vector.load %arg4[%c0_57, %c0_58, %c0_59] : memref<3x80x64xf32, #tpu.memory_space<vmem>>, vector<1x80x64xf32>
    %41 = vector.shape_cast %40 : vector<1x80x64xf32> to vector<80x64xf32>
    %cst_60 = arith.constant dense<0.000000e+00> : vector<32x64xf32>
    %42 = tpu.matmul %39, %41, %cst_60 {dimension_numbers = #tpu.dot_dimension_numbers<[1], [0], [0], [1], [0, 0, 1, 1], [], []>} : vector<32x80xf32>, vector<80x64xf32>, vector<32x64xf32> -> vector<32x64xf32>
    %c0_61 = arith.constant 0 : index
    %c1_62 = arith.constant 1 : index
    %c0_63 = arith.constant 0 : index
    %43 = vector.load %arg13[%c0_61, %c1_62, %c0_63] : memref<4x10x80xf32, #tpu.memory_space<vmem>>, vector<4x8x80xf32>
    %44 = vector.shape_cast %43 : vector<4x8x80xf32> to vector<32x80xf32>
    %c1_64 = arith.constant 1 : index
    %c0_65 = arith.constant 0 : index
    %c0_66 = arith.constant 0 : index
    %45 = vector.load %arg4[%c1_64, %c0_65, %c0_66] : memref<3x80x64xf32, #tpu.memory_space<vmem>>, vector<1x80x64xf32>
    %46 = vector.shape_cast %45 : vector<1x80x64xf32> to vector<80x64xf32>
    %cst_67 = arith.constant dense<0.000000e+00> : vector<32x64xf32>
    %47 = tpu.matmul %44, %46, %cst_67 {dimension_numbers = #tpu.dot_dimension_numbers<[1], [0], [0], [1], [0, 0, 1, 1], [], []>} : vector<32x80xf32>, vector<80x64xf32>, vector<32x64xf32> -> vector<32x64xf32>
    %48 = arith.addf %42, %47 : vector<32x64xf32>
    %c0_68 = arith.constant 0 : index
    %c2_69 = arith.constant 2 : index
    %c0_70 = arith.constant 0 : index
    %49 = vector.load %arg13[%c0_68, %c2_69, %c0_70] : memref<4x10x80xf32, #tpu.memory_space<vmem>>, vector<4x8x80xf32>
    %50 = vector.shape_cast %49 : vector<4x8x80xf32> to vector<32x80xf32>
    %c2_71 = arith.constant 2 : index
    %c0_72 = arith.constant 0 : index
    %c0_73 = arith.constant 0 : index
    %51 = vector.load %arg4[%c2_71, %c0_72, %c0_73] : memref<3x80x64xf32, #tpu.memory_space<vmem>>, vector<1x80x64xf32>
    %52 = vector.shape_cast %51 : vector<1x80x64xf32> to vector<80x64xf32>
    %cst_74 = arith.constant dense<0.000000e+00> : vector<32x64xf32>
    %53 = tpu.matmul %50, %52, %cst_74 {dimension_numbers = #tpu.dot_dimension_numbers<[1], [0], [0], [1], [0, 0, 1, 1], [], []>} : vector<32x80xf32>, vector<80x64xf32>, vector<32x64xf32> -> vector<32x64xf32>
    %54 = arith.addf %48, %53 : vector<32x64xf32>
    %c0_75 = arith.constant 0 : index
    %c0_76 = arith.constant 0 : index
    %55 = vector.load %arg5[%c0_75, %c0_76] : memref<1x64xf32, #tpu.memory_space<vmem>>, vector<1x64xf32>
    %56 = vector.broadcast %55 : vector<1x64xf32> to vector<32x64xf32>
    %57 = arith.addf %54, %56 : vector<32x64xf32>
    %58 = math.tanh %57 : vector<32x64xf32>
    %59 = vector.shape_cast %58 : vector<32x64xf32> to vector<4x8x64xf32>
    %60 = vector.extract_strided_slice %59 {offsets = [0, 0, 0], sizes = [4, 1, 64], strides = [1, 1, 1]} : vector<4x8x64xf32> to vector<4x1x64xf32>
    %61 = vector.shape_cast %60 : vector<4x1x64xf32> to vector<4x64xf32>
    %c0_77 = arith.constant 0 : index
    %c0_78 = arith.constant 0 : index
    %62 = vector.load %arg14[%c0_77, %c0_78] : memref<4x512xf32, #tpu.memory_space<vmem>>, vector<4x64xf32>
    tpu.vector_store %arg14[%c0_77, %c0_78], %61 {strides = array<i32>} : memref<4x512xf32, #tpu.memory_space<vmem>>, vector<4x64xf32>,
    %63 = vector.extract_strided_slice %59 {offsets = [0, 1, 0], sizes = [4, 1, 64], strides = [1, 1, 1]} : vector<4x8x64xf32> to vector<4x1x64xf32>
    %64 = vector.shape_cast %63 : vector<4x1x64xf32> to vector<4x64xf32>
    %c0_79 = arith.constant 0 : index
    %c64 = arith.constant 64 : index
    %65 = vector.load %arg14[%c0_79, %c64] : memref<4x512xf32, #tpu.memory_space<vmem>>, vector<4x64xf32>
    tpu.vector_store %arg14[%c0_79, %c64], %64 {strides = array<i32>} : memref<4x512xf32, #tpu.memory_space<vmem>>, vector<4x64xf32>,
    %66 = vector.extract_strided_slice %59 {offsets = [0, 2, 0], sizes = [4, 1, 64], strides = [1, 1, 1]} : vector<4x8x64xf32> to vector<4x1x64xf32>
    %67 = vector.shape_cast %66 : vector<4x1x64xf32> to vector<4x64xf32>
    %c0_80 = arith.constant 0 : index
    %c128 = arith.constant 128 : index
    %68 = vector.load %arg14[%c0_80, %c128] : memref<4x512xf32, #tpu.memory_space<vmem>>, vector<4x64xf32>
    tpu.vector_store %arg14[%c0_80, %c128], %67 {strides = array<i32>} : memref<4x512xf32, #tpu.memory_space<vmem>>, vector<4x64xf32>,
    %69 = vector.extract_strided_slice %59 {offsets = [0, 3, 0], sizes = [4, 1, 64], strides = [1, 1, 1]} : vector<4x8x64xf32> to vector<4x1x64xf32>
    %70 = vector.shape_cast %69 : vector<4x1x64xf32> to vector<4x64xf32>
    %c0_81 = arith.constant 0 : index
    %c192 = arith.constant 192 : index
    %71 = vector.load %arg14[%c0_81, %c192] : memref<4x512xf32, #tpu.memory_space<vmem>>, vector<4x64xf32>
    tpu.vector_store %arg14[%c0_81, %c192], %70 {strides = array<i32>} : memref<4x512xf32, #tpu.memory_space<vmem>>, vector<4x64xf32>,
    %72 = vector.extract_strided_slice %59 {offsets = [0, 4, 0], sizes = [4, 1, 64], strides = [1, 1, 1]} : vector<4x8x64xf32> to vector<4x1x64xf32>
    %73 = vector.shape_cast %72 : vector<4x1x64xf32> to vector<4x64xf32>
    %c0_82 = arith.constant 0 : index
    %c256 = arith.constant 256 : index
    %74 = vector.load %arg14[%c0_82, %c256] : memref<4x512xf32, #tpu.memory_space<vmem>>, vector<4x64xf32>
    tpu.vector_store %arg14[%c0_82, %c256], %73 {strides = array<i32>} : memref<4x512xf32, #tpu.memory_space<vmem>>, vector<4x64xf32>,
    %75 = vector.extract_strided_slice %59 {offsets = [0, 5, 0], sizes = [4, 1, 64], strides = [1, 1, 1]} : vector<4x8x64xf32> to vector<4x1x64xf32>
    %76 = vector.shape_cast %75 : vector<4x1x64xf32> to vector<4x64xf32>
    %c0_83 = arith.constant 0 : index
    %c320 = arith.constant 320 : index
    %77 = vector.load %arg14[%c0_83, %c320] : memref<4x512xf32, #tpu.memory_space<vmem>>, vector<4x64xf32>
    tpu.vector_store %arg14[%c0_83, %c320], %76 {strides = array<i32>} : memref<4x512xf32, #tpu.memory_space<vmem>>, vector<4x64xf32>,
    %78 = vector.extract_strided_slice %59 {offsets = [0, 6, 0], sizes = [4, 1, 64], strides = [1, 1, 1]} : vector<4x8x64xf32> to vector<4x1x64xf32>
    %79 = vector.shape_cast %78 : vector<4x1x64xf32> to vector<4x64xf32>
    %c0_84 = arith.constant 0 : index
    %c384 = arith.constant 384 : index
    %80 = vector.load %arg14[%c0_84, %c384] : memref<4x512xf32, #tpu.memory_space<vmem>>, vector<4x64xf32>
    tpu.vector_store %arg14[%c0_84, %c384], %79 {strides = array<i32>} : memref<4x512xf32, #tpu.memory_space<vmem>>, vector<4x64xf32>,
    %81 = vector.extract_strided_slice %59 {offsets = [0, 7, 0], sizes = [4, 1, 64], strides = [1, 1, 1]} : vector<4x8x64xf32> to vector<4x1x64xf32>
    %82 = vector.shape_cast %81 : vector<4x1x64xf32> to vector<4x64xf32>
    %c0_85 = arith.constant 0 : index
    %c448 = arith.constant 448 : index
    %83 = vector.load %arg14[%c0_85, %c448] : memref<4x512xf32, #tpu.memory_space<vmem>>, vector<4x64xf32>
    tpu.vector_store %arg14[%c0_85, %c448], %82 {strides = array<i32>} : memref<4x512xf32, #tpu.memory_space<vmem>>, vector<4x64xf32>,
    %c0_86 = arith.constant 0 : index
    %c0_87 = arith.constant 0 : index
    %84 = vector.load %arg14[%c0_86, %c0_87] : memref<4x512xf32, #tpu.memory_space<vmem>>, vector<4x512xf32>
    %c0_88 = arith.constant 0 : index
    %c0_89 = arith.constant 0 : index
    %85 = vector.load %arg6[%c0_88, %c0_89] : memref<512x32xf32, #tpu.memory_space<vmem>>, vector<512x32xf32>
    %cst_90 = arith.constant dense<0.000000e+00> : vector<4x32xf32>
    %86 = tpu.matmul %84, %85, %cst_90 {dimension_numbers = #tpu.dot_dimension_numbers<[1], [0], [0], [1], [0, 0, 1, 1], [], []>} : vector<4x512xf32>, vector<512x32xf32>, vector<4x32xf32> -> vector<4x32xf32>
    %c0_91 = arith.constant 0 : index
    %c0_92 = arith.constant 0 : index
    %87 = vector.load %arg7[%c0_91, %c0_92] : memref<1x32xf32, #tpu.memory_space<vmem>>, vector<1x32xf32>
    %88 = vector.broadcast %87 : vector<1x32xf32> to vector<4x32xf32>
    %89 = arith.addf %86, %88 : vector<4x32xf32>
    %90 = math.tanh %89 : vector<4x32xf32>
    %c0_93 = arith.constant 0 : index
    %c0_94 = arith.constant 0 : index
    %91 = vector.load %arg8[%c0_93, %c0_94] : memref<32x32xf32, #tpu.memory_space<vmem>>, vector<32x32xf32>
    %cst_95 = arith.constant dense<0.000000e+00> : vector<4x32xf32>
    %92 = tpu.matmul %90, %91, %cst_95 {dimension_numbers = #tpu.dot_dimension_numbers<[1], [0], [0], [1], [0, 0, 1, 1], [], []>} : vector<4x32xf32>, vector<32x32xf32>, vector<4x32xf32> -> vector<4x32xf32>
    %c0_96 = arith.constant 0 : index
    %c0_97 = arith.constant 0 : index
    %93 = vector.load %arg9[%c0_96, %c0_97] : memref<1x32xf32, #tpu.memory_space<vmem>>, vector<1x32xf32>
    %94 = vector.broadcast %93 : vector<1x32xf32> to vector<4x32xf32>
    %95 = arith.addf %92, %94 : vector<4x32xf32>
    %96 = math.tanh %95 : vector<4x32xf32>
    %c0_98 = arith.constant 0 : index
    %c0_99 = arith.constant 0 : index
    %97 = vector.load %arg10[%c0_98, %c0_99] : memref<32x128xf32, #tpu.memory_space<vmem>>, vector<32x128xf32>
    %cst_100 = arith.constant dense<0.000000e+00> : vector<4x128xf32>
    %98 = tpu.matmul %96, %97, %cst_100 {dimension_numbers = #tpu.dot_dimension_numbers<[1], [0], [0], [1], [0, 0, 1, 1], [], []>} : vector<4x32xf32>, vector<32x128xf32>, vector<4x128xf32> -> vector<4x128xf32>
    %c0_101 = arith.constant 0 : index
    %c0_102 = arith.constant 0 : index
    %99 = vector.load %arg11[%c0_101, %c0_102] : memref<1x128xf32, #tpu.memory_space<vmem>>, vector<1x128xf32>
    %100 = vector.broadcast %99 : vector<1x128xf32> to vector<4x128xf32>
    %101 = arith.addf %98, %100 : vector<4x128xf32>
    %102 = math.tanh %101 : vector<4x128xf32>
    %cst_103 = arith.constant 3.14159274 : f32
    %103 = vector.broadcast %cst_103 : f32 to vector<4x128xf32>
    %104 = arith.mulf %103, %102 : vector<4x128xf32>
    %c0_104 = arith.constant 0 : index
    %c0_105 = arith.constant 0 : index
    %c0_106 = arith.constant 0 : index
    %105 = vector.load %arg12[%c0_104, %c0_105, %c0_106] : memref<1x4x128xf32, #tpu.memory_space<vmem>>, vector<1x4x128xf32>
    %106 = vector.shape_cast %105 : vector<1x4x128xf32> to vector<4x128xf32>
    %107 = vector.shape_cast %104 : vector<4x128xf32> to vector<1x4x128xf32>
    tpu.vector_store %arg12[%c0_104, %c0_105, %c0_106], %107 {strides = array<i32>} : memref<1x4x128xf32, #tpu.memory_space<vmem>>, vector<1x4x128xf32>,
    return
  }
  func.func @transform_0(%arg0: i32) -> (i32, i32, i32, i32) {
    %c0_i32 = arith.constant 0 : i32
    %c0_i32_0 = arith.constant 0 : i32
    %c0_i32_1 = arith.constant 0 : i32
    %c0_i32_2 = arith.constant 0 : i32
    return %arg0, %c0_i32, %c0_i32_0, %c0_i32_1 : i32, i32, i32, i32
  }
  func.func @transform_1(%arg0: i32) -> (i32, i32, i32) {
    %c0_i32 = arith.constant 0 : i32
    %c0_i32_0 = arith.constant 0 : i32
    %c0_i32_1 = arith.constant 0 : i32
    %c0_i32_2 = arith.constant 0 : i32
    return %c0_i32, %c0_i32_0, %c0_i32_1 : i32, i32, i32
  }
  func.func @transform_2(%arg0: i32) -> (i32, i32) {
    %c0_i32 = arith.constant 0 : i32
    %c0_i32_0 = arith.constant 0 : i32
    %c0_i32_1 = arith.constant 0 : i32
    return %c0_i32, %c0_i32_0 : i32, i32
  }
  func.func @transform_3(%arg0: i32) -> (i32, i32, i32) {
    %c0_i32 = arith.constant 0 : i32
    %c0_i32_0 = arith.constant 0 : i32
    %c0_i32_1 = arith.constant 0 : i32
    %c0_i32_2 = arith.constant 0 : i32
    return %c0_i32, %c0_i32_0, %c0_i32_1 : i32, i32, i32
  }
  func.func @transform_4(%arg0: i32) -> (i32, i32) {
    %c0_i32 = arith.constant 0 : i32
    %c0_i32_0 = arith.constant 0 : i32
    %c0_i32_1 = arith.constant 0 : i32
    return %c0_i32, %c0_i32_0 : i32, i32
  }
  func.func @transform_5(%arg0: i32) -> (i32, i32) {
    %c0_i32 = arith.constant 0 : i32
    %c0_i32_0 = arith.constant 0 : i32
    %c0_i32_1 = arith.constant 0 : i32
    return %c0_i32, %c0_i32_0 : i32, i32
  }
  func.func @transform_6(%arg0: i32) -> (i32, i32) {
    %c0_i32 = arith.constant 0 : i32
    %c0_i32_0 = arith.constant 0 : i32
    %c0_i32_1 = arith.constant 0 : i32
    return %c0_i32, %c0_i32_0 : i32, i32
  }
  func.func @transform_7(%arg0: i32) -> (i32, i32) {
    %c0_i32 = arith.constant 0 : i32
    %c0_i32_0 = arith.constant 0 : i32
    %c0_i32_1 = arith.constant 0 : i32
    return %c0_i32, %c0_i32_0 : i32, i32
  }
  func.func @transform_8(%arg0: i32) -> (i32, i32) {
    %c0_i32 = arith.constant 0 : i32
    %c0_i32_0 = arith.constant 0 : i32
    %c0_i32_1 = arith.constant 0 : i32
    return %c0_i32, %c0_i32_0 : i32, i32
  }
  func.func @transform_9(%arg0: i32) -> (i32, i32) {
    %c0_i32 = arith.constant 0 : i32
    %c0_i32_0 = arith.constant 0 : i32
    %c0_i32_1 = arith.constant 0 : i32
    return %c0_i32, %c0_i32_0 : i32, i32
  }
  func.func @transform_10(%arg0: i32) -> (i32, i32) {
    %c0_i32 = arith.constant 0 : i32
    %c0_i32_0 = arith.constant 0 : i32
    %c0_i32_1 = arith.constant 0 : i32
    return %c0_i32, %c0_i32_0 : i32, i32
  }
  func.func @transform_11(%arg0: i32) -> (i32, i32, i32) {
    %c0_i32 = arith.constant 0 : i32
    %c0_i32_0 = arith.constant 0 : i32
    %c0_i32_1 = arith.constant 0 : i32
    return %arg0, %c0_i32, %c0_i32_0 : i32, i32, i32
  }
}

</mosaic_0001>

<llo_original>
// kernel: tpu_custom_call.1
$region0: #{tpu_custom_call.1}
  #allocation0 [shape = 'u32[]', space=smem, size = 0x4, offset = 0x4, fixed_abs, tag = 'smem constant byte address 0x4 - core index']
  #allocation1 [shape = 'u32[144,128]{1,0:T(1,128)}', space=vmem, size = 0x12000, scoped, tag = 'internal scratch']
  #allocation2 [shape = 'f32[4,10,80]{2,1,0:T(8,128)}', space=vmem, size = 0x8000, scoped, tag = 'scratch operand']
  #allocation3 [shape = 'f32[4,512]{1,0:T(4,128)}', space=vmem, size = 0x2000, scoped, tag = 'scratch operand']
  %s0 = inlined_call_operand.vmem [shape: f32[2,4,8,8], index: 0, kind: input, shape index: {}]
  %s1 = inlined_call_operand.vmem [shape: f32[3,10,64], index: 1, kind: input, shape index: {}]
  %s2 = inlined_call_operand.vmem [shape: f32[1,64], index: 2, kind: input, shape index: {}]
  %s3 = inlined_call_operand.vmem [shape: f32[3,80,64], index: 3, kind: input, shape index: {}]
  %s4 = inlined_call_operand.vmem [shape: f32[1,64], index: 4, kind: input, shape index: {}]
  %s5 = inlined_call_operand.vmem [shape: f32[512,32], index: 5, kind: input, shape index: {}]
  %s6 = inlined_call_operand.vmem [shape: f32[1,32], index: 6, kind: input, shape index: {}]
  %s7 = inlined_call_operand.vmem [shape: f32[32,32], index: 7, kind: input, shape index: {}]
  %s8 = inlined_call_operand.vmem [shape: f32[1,32], index: 8, kind: input, shape index: {}]
  %s9 = inlined_call_operand.vmem [shape: f32[32,128], index: 9, kind: input, shape index: {}]
  %s10 = inlined_call_operand.vmem [shape: f32[1,128], index: 10, kind: input, shape index: {}]
  %s11 = inlined_call_operand.hbm [shape: f32[2,4,128], index: 11, kind: output, shape index: {}]
  %s12 = sld [smem:[#allocation0]]
  $region77: #{tpu_custom_call.1} parent=0
    _
  %s14 = ssub.s32 1, %s12
  %s15 = scalar_select 0, %s14, %s12
  $region1: #{tpu_custom_call.1} parent=0
    #allocation4 [shape = 'u8[4096]{0}', space=vmem, size = 0x1000, scoped, tag = 'output window, operand 0']
    #allocation5 [shape = 's32[2]{0}', space=sflag, size = 0x8, scoped, tag = 'scoped memory for tpu_custom_call.1']
    %16 = vsyncpa [#allocation5], 0
    %s17 = scalar_lea.sflag [#allocation5], 1
    %18 = vsyncpa %s17, 0
    loop: start=0, step=1, limit=4
    $region2: #{tpu_custom_call.1} parent=1 // loop_pre_header
      _
    $region3: #{tpu_custom_call.1} parent=1 // loop_header
      %s20 = sphi 0, %s24
      %p21 = scmp.ge.s32.totalorder %s20, 4
      %s30 = sphi 0, %s32
      %s33 = sphi 0, %s30
      %s34 = sphi 0, %s33
      %s50 = sphi 0, %s34
      %s54 = sphi 0, %s54
      %s56 = sphi 0, %s54
      %s57 = sphi 0, %s56
      %s71 = sphi 0, %s57
      %s75 = sphi 0, %s75
      %s77 = sphi 0, %s75
      %s78 = sphi 0, %s77
      %s92 = sphi 0, %s78
      %s96 = sphi 0, %s96
      %s98 = sphi 0, %s96
      %s99 = sphi 0, %s98
      %s113 = sphi 0, %s99
      %s117 = sphi 0, %s117
      %s119 = sphi 0, %s117
      %s120 = sphi 0, %s119
      %s134 = sphi 0, %s120
      %s138 = sphi 0, %s138
      %s140 = sphi 0, %s138
      %s141 = sphi 0, %s140
      %s155 = sphi 0, %s141
      %s159 = sphi 0, %s159
      %s161 = sphi 0, %s159
      %s162 = sphi 0, %s161
      %s176 = sphi 0, %s162
      %s180 = sphi 0, %s180
      %s182 = sphi 0, %s180
      %s183 = sphi 0, %s182
      %s197 = sphi 0, %s183
      %s201 = sphi 0, %s201
      %s203 = sphi 0, %s201
      %s204 = sphi 0, %s203
      %s218 = sphi 0, %s204
      %s222 = sphi 0, %s222
      %s224 = sphi 0, %s222
      %s225 = sphi 0, %s224
      %s239 = sphi 0, %s225
      %s243 = sphi 0, %s243
      %s245 = sphi 0, %s243
      %s246 = sphi 0, %s245
      %s260 = sphi 0, %s246
      %s266 = sphi 0, %s268
      %s269 = sphi 0, %s266
      %s270 = sphi 0, %s269
      %s286 = sphi 0, %s270
    $region4: #{tpu_custom_call.1} parent=1 // loop_header_branch
      %23 = sbr.rel (%p21) target = $region8
    $region5: #{tpu_custom_call.1} parent=1 // loop_body
      %s25 = ssub.s32 %s20, 1
      %s26 = ssub.s32 %s20, 2
      %s27 = sadd.s32 %s20, 1
      %s28 = ssub.s32 %s20, %s27
      %p29 = scmp.eq.s32.totalorder %s28, 0
      %s31 = sadd.s32 %s30, 1
      %s32 = scalar_select %p29, %s30, %s31
      %p35 = pneg %p29
      %p36 = scmp.eq.s32.totalorder %s20, 1
      %p37 = por %p35, %p36
      %p38 = scmp.ne.s32.totalorder %s30, %s33
      %p39 = scmp.eq.s32.totalorder %s20, 0
      %p40 = por %p38, %p39
      %p41 = scmp.ne.s32.totalorder %s30, %s33
      %p42 = scmp.eq.s32.totalorder %s25, 1
      %p43 = por %p41, %p42
      %p44 = scmp.ne.s32.totalorder %s33, %s34
      %p45 = scmp.eq.s32.totalorder %s25, 0
      %p46 = por %p44, %p45
      %p47 = scmp.ne.s32.totalorder %s33, %s34
      %p48 = scmp.eq.s32.totalorder %s26, 1
      %p49 = por %p47, %p48
      %p51 = scmp.ne.s32.totalorder %s34, %s50
      %p52 = scmp.eq.s32.totalorder %s26, 0
      %p53 = por %p51, %p52
      %s55 = sadd.s32 %s54, 1
      %p58 = scmp.eq.s32.totalorder %s20, 1
      %p59 = scmp.ne.s32.totalorder %s54, %s56
      %p60 = scmp.eq.s32.totalorder %s20, 0
      %p61 = por %p59, %p60
      %p62 = scmp.ne.s32.totalorder %s54, %s56
      %p63 = scmp.eq.s32.totalorder %s25, 1
      %p64 = por %p62, %p63
      %p65 = scmp.ne.s32.totalorder %s56, %s57
      %p66 = scmp.eq.s32.totalorder %s25, 0
      %p67 = por %p65, %p66
      %p68 = scmp.ne.s32.totalorder %s56, %s57
      %p69 = scmp.eq.s32.totalorder %s26, 1
      %p70 = por %p68, %p69
      %p72 = scmp.ne.s32.totalorder %s57, %s71
      %p73 = scmp.eq.s32.totalorder %s26, 0
      %p74 = por %p72, %p73
      %s76 = sadd.s32 %s75, 1
      %p79 = scmp.eq.s32.totalorder %s20, 1
      %p80 = scmp.ne.s32.totalorder %s75, %s77
      %p81 = scmp.eq.s32.totalorder %s20, 0
      %p82 = por %p80, %p81
      %p83 = scmp.ne.s32.totalorder %s75, %s77
      %p84 = scmp.eq.s32.totalorder %s25, 1
      %p85 = por %p83, %p84
      %p86 = scmp.ne.s32.totalorder %s77, %s78
      %p87 = scmp.eq.s32.totalorder %s25, 0
      %p88 = por %p86, %p87
      %p89 = scmp.ne.s32.totalorder %s77, %s78
      %p90 = scmp.eq.s32.totalorder %s26, 1
      %p91 = por %p89, %p90
      %p93 = scmp.ne.s32.totalorder %s78, %s92
      %p94 = scmp.eq.s32.totalorder %s26, 0
      %p95 = por %p93, %p94
      %s97 = sadd.s32 %s96, 1
      %p100 = scmp.eq.s32.totalorder %s20, 1
      %p101 = scmp.ne.s32.totalorder %s96, %s98
      %p102 = scmp.eq.s32.totalorder %s20, 0
      %p103 = por %p101, %p102
      %p104 = scmp.ne.s32.totalorder %s96, %s98
      %p105 = scmp.eq.s32.totalorder %s25, 1
      %p106 = por %p104, %p105
      %p107 = scmp.ne.s32.totalorder %s98, %s99
      %p108 = scmp.eq.s32.totalorder %s25, 0
      %p109 = por %p107, %p108
      %p110 = scmp.ne.s32.totalorder %s98, %s99
      %p111 = scmp.eq.s32.totalorder %s26, 1
      %p112 = por %p110, %p111
      %p114 = scmp.ne.s32.totalorder %s99, %s113
      %p115 = scmp.eq.s32.totalorder %s26, 0
      %p116 = por %p114, %p115
      %s118 = sadd.s32 %s117, 1
      %p121 = scmp.eq.s32.totalorder %s20, 1
      %p122 = scmp.ne.s32.totalorder %s117, %s119
      %p123 = scmp.eq.s32.totalorder %s20, 0
      %p124 = por %p122, %p123
      %p125 = scmp.ne.s32.totalorder %s117, %s119
      %p126 = scmp.eq.s32.totalorder %s25, 1
      %p127 = por %p125, %p126
      %p128 = scmp.ne.s32.totalorder %s119, %s120
      %p129 = scmp.eq.s32.totalorder %s25, 0
      %p130 = por %p128, %p129
      %p131 = scmp.ne.s32.totalorder %s119, %s120
      %p132 = scmp.eq.s32.totalorder %s26, 1
      %p133 = por %p131, %p132
      %p135 = scmp.ne.s32.totalorder %s120, %s134
      %p136 = scmp.eq.s32.totalorder %s26, 0
      %p137 = por %p135, %p136
      %s139 = sadd.s32 %s138, 1
      %p142 = scmp.eq.s32.totalorder %s20, 1
      %p143 = scmp.ne.s32.totalorder %s138, %s140
      %p144 = scmp.eq.s32.totalorder %s20, 0
      %p145 = por %p143, %p144
      %p146 = scmp.ne.s32.totalorder %s138, %s140
      %p147 = scmp.eq.s32.totalorder %s25, 1
      %p148 = por %p146, %p147
      %p149 = scmp.ne.s32.totalorder %s140, %s141
      %p150 = scmp.eq.s32.totalorder %s25, 0
      %p151 = por %p149, %p150
      %p152 = scmp.ne.s32.totalorder %s140, %s141
      %p153 = scmp.eq.s32.totalorder %s26, 1
      %p154 = por %p152, %p153
      %p156 = scmp.ne.s32.totalorder %s141, %s155
      %p157 = scmp.eq.s32.totalorder %s26, 0
      %p158 = por %p156, %p157
      %s160 = sadd.s32 %s159, 1
      %p163 = scmp.eq.s32.totalorder %s20, 1
      %p164 = scmp.ne.s32.totalorder %s159, %s161
      %p165 = scmp.eq.s32.totalorder %s20, 0
      %p166 = por %p164, %p165
      %p167 = scmp.ne.s32.totalorder %s159, %s161
      %p168 = scmp.eq.s32.totalorder %s25, 1
      %p169 = por %p167, %p168
      %p170 = scmp.ne.s32.totalorder %s161, %s162
      %p171 = scmp.eq.s32.totalorder %s25, 0
      %p172 = por %p170, %p171
      %p173 = scmp.ne.s32.totalorder %s161, %s162
      %p174 = scmp.eq.s32.totalorder %s26, 1
      %p175 = por %p173, %p174
      %p177 = scmp.ne.s32.totalorder %s162, %s176
      %p178 = scmp.eq.s32.totalorder %s26, 0
      %p179 = por %p177, %p178
      %s181 = sadd.s32 %s180, 1
      %p184 = scmp.eq.s32.totalorder %s20, 1
      %p185 = scmp.ne.s32.totalorder %s180, %s182
      %p186 = scmp.eq.s32.totalorder %s20, 0
      %p187 = por %p185, %p186
      %p188 = scmp.ne.s32.totalorder %s180, %s182
      %p189 = scmp.eq.s32.totalorder %s25, 1
      %p190 = por %p188, %p189
      %p191 = scmp.ne.s32.totalorder %s182, %s183
      %p192 = scmp.eq.s32.totalorder %s25, 0
      %p193 = por %p191, %p192
      %p194 = scmp.ne.s32.totalorder %s182, %s183
      %p195 = scmp.eq.s32.totalorder %s26, 1
      %p196 = por %p194, %p195
      %p198 = scmp.ne.s32.totalorder %s183, %s197
      %p199 = scmp.eq.s32.totalorder %s26, 0
      %p200 = por %p198, %p199
      %s202 = sadd.s32 %s201, 1
      %p205 = scmp.eq.s32.totalorder %s20, 1
      %p206 = scmp.ne.s32.totalorder %s201, %s203
      %p207 = scmp.eq.s32.totalorder %s20, 0
      %p208 = por %p206, %p207
      %p209 = scmp.ne.s32.totalorder %s201, %s203
      %p210 = scmp.eq.s32.totalorder %s25, 1
      %p211 = por %p209, %p210
      %p212 = scmp.ne.s32.totalorder %s203, %s204
      %p213 = scmp.eq.s32.totalorder %s25, 0
      %p214 = por %p212, %p213
      %p215 = scmp.ne.s32.totalorder %s203, %s204
      %p216 = scmp.eq.s32.totalorder %s26, 1
      %p217 = por %p215, %p216
      %p219 = scmp.ne.s32.totalorder %s204, %s218
      %p220 = scmp.eq.s32.totalorder %s26, 0
      %p221 = por %p219, %p220
      %s223 = sadd.s32 %s222, 1
      %p226 = scmp.eq.s32.totalorder %s20, 1
      %p227 = scmp.ne.s32.totalorder %s222, %s224
      %p228 = scmp.eq.s32.totalorder %s20, 0
      %p229 = por %p227, %p228
      %p230 = scmp.ne.s32.totalorder %s222, %s224
      %p231 = scmp.eq.s32.totalorder %s25, 1
      %p232 = por %p230, %p231
      %p233 = scmp.ne.s32.totalorder %s224, %s225
      %p234 = scmp.eq.s32.totalorder %s25, 0
      %p235 = por %p233, %p234
      %p236 = scmp.ne.s32.totalorder %s224, %s225
      %p237 = scmp.eq.s32.totalorder %s26, 1
      %p238 = por %p236, %p237
      %p240 = scmp.ne.s32.totalorder %s225, %s239
      %p241 = scmp.eq.s32.totalorder %s26, 0
      %p242 = por %p240, %p241
      %s244 = sadd.s32 %s243, 1
      %p247 = scmp.eq.s32.totalorder %s20, 1
      %p248 = scmp.ne.s32.totalorder %s243, %s245
      %p249 = scmp.eq.s32.totalorder %s20, 0
      %p250 = por %p248, %p249
      %p251 = scmp.ne.s32.totalorder %s243, %s245
      %p252 = scmp.eq.s32.totalorder %s25, 1
      %p253 = por %p251, %p252
      %p254 = scmp.ne.s32.totalorder %s245, %s246
      %p255 = scmp.eq.s32.totalorder %s25, 0
      %p256 = por %p254, %p255
      %p257 = scmp.ne.s32.totalorder %s245, %s246
      %p258 = scmp.eq.s32.totalorder %s26, 1
      %p259 = por %p257, %p258
      %p261 = scmp.ne.s32.totalorder %s246, %s260
      %p262 = scmp.eq.s32.totalorder %s26, 0
      %p263 = por %p261, %p262
      %s264 = ssub.s32 %s20, %s27
      %p265 = scmp.eq.s32.totalorder %s264, 0
      %s267 = sadd.s32 %s266, 1
      %s268 = scalar_select %p265, %s266, %s267
      %p271 = pneg %p265
      %p272 = scmp.eq.s32.totalorder %s20, 1
      %p273 = por %p271, %p272
      %p274 = scmp.ne.s32.totalorder %s266, %s269
      %p275 = scmp.eq.s32.totalorder %s20, 0
      %p276 = por %p274, %p275
      %p277 = scmp.ne.s32.totalorder %s266, %s269
      %p278 = scmp.eq.s32.totalorder %s25, 1
      %p279 = por %p277, %p278
      %p280 = scmp.ne.s32.totalorder %s269, %s270
      %p281 = scmp.eq.s32.totalorder %s25, 0
      %p282 = por %p280, %p281
      %p283 = scmp.ne.s32.totalorder %s269, %s270
      %p284 = scmp.eq.s32.totalorder %s26, 1
      %p285 = por %p283, %p284
      %p287 = scmp.ne.s32.totalorder %s270, %s286
      %p288 = scmp.eq.s32.totalorder %s26, 0
      %p289 = por %p287, %p288
      %p290 = scmp.le.s32.totalorder 1, %s20
      %p291 = scmp.lt.s32.totalorder %s20, 3
      %p292 = pnand %p290, %p291
      %p293 = pneg %p292
      // Predicated region
      $region9: #{tpu_custom_call.1} parent=5 // pred_check
        _
      $region10: #{tpu_custom_call.1} parent=5 // pred_check_branch
        %295 = sbr.rel (%p292) target = $region12
      $region11: #{tpu_custom_call.1} parent=5 // pred_region
        %s296 = ssub.s32 %s20, 1
        // Predicated region
        $region13: #{tpu_custom_call.1} parent=11 // pred_check
          %p297 = pneg %p67
        $region14: #{tpu_custom_call.1} parent=11 // pred_check_branch
          %299 = sbr.rel (%p297) target = $region16
        $region15: #{tpu_custom_call.1} parent=11 // pred_region
          _
        $region16: #{tpu_custom_call.1} parent=11 // pred_fallthru
          _
        // Predicated region
        $region17: #{tpu_custom_call.1} parent=11 // pred_check
          %p300 = pneg %p88
        $region18: #{tpu_custom_call.1} parent=11 // pred_check_branch
          %302 = sbr.rel (%p300) target = $region20
        $region19: #{tpu_custom_call.1} parent=11 // pred_region
          _
        $region20: #{tpu_custom_call.1} parent=11 // pred_fallthru
          _
        // Predicated region
        $region21: #{tpu_custom_call.1} parent=11 // pred_check
          %p303 = pneg %p109
        $region22: #{tpu_custom_call.1} parent=11 // pred_check_branch
          %305 = sbr.rel (%p303) target = $region24
        $region23: #{tpu_custom_call.1} parent=11 // pred_region
          _
        $region24: #{tpu_custom_call.1} parent=11 // pred_fallthru
          _
        // Predicated region
        $region25: #{tpu_custom_call.1} parent=11 // pred_check
          %p306 = pneg %p130
        $region26: #{tpu_custom_call.1} parent=11 // pred_check_branch
          %308 = sbr.rel (%p306) target = $region28
        $region27: #{tpu_custom_call.1} parent=11 // pred_region
          _
        $region28: #{tpu_custom_call.1} parent=11 // pred_fallthru
          _
        // Predicated region
        $region29: #{tpu_custom_call.1} parent=11 // pred_check
          %p309 = pneg %p151
        $region30: #{tpu_custom_call.1} parent=11 // pred_check_branch
          %311 = sbr.rel (%p309) target = $region32
        $region31: #{tpu_custom_call.1} parent=11 // pred_region
          _
        $region32: #{tpu_custom_call.1} parent=11 // pred_fallthru
          _
        // Predicated region
        $region33: #{tpu_custom_call.1} parent=11 // pred_check
          %p312 = pneg %p172
        $region34: #{tpu_custom_call.1} parent=11 // pred_check_branch
          %314 = sbr.rel (%p312) target = $region36
        $region35: #{tpu_custom_call.1} parent=11 // pred_region
          _
        $region36: #{tpu_custom_call.1} parent=11 // pred_fallthru
          _
        // Predicated region
        $region37: #{tpu_custom_call.1} parent=11 // pred_check
          %p315 = pneg %p193
        $region38: #{tpu_custom_call.1} parent=11 // pred_check_branch
          %317 = sbr.rel (%p315) target = $region40
        $region39: #{tpu_custom_call.1} parent=11 // pred_region
          _
        $region40: #{tpu_custom_call.1} parent=11 // pred_fallthru
          _
        // Predicated region
        $region41: #{tpu_custom_call.1} parent=11 // pred_check
          %p318 = pneg %p214
        $region42: #{tpu_custom_call.1} parent=11 // pred_check_branch
          %320 = sbr.rel (%p318) target = $region44
        $region43: #{tpu_custom_call.1} parent=11 // pred_region
          _
        $region44: #{tpu_custom_call.1} parent=11 // pred_fallthru
          _
        // Predicated region
        $region45: #{tpu_custom_call.1} parent=11 // pred_check
          %p321 = pneg %p235
        $region46: #{tpu_custom_call.1} parent=11 // pred_check_branch
          %323 = sbr.rel (%p321) target = $region48
        $region47: #{tpu_custom_call.1} parent=11 // pred_region
          _
        $region48: #{tpu_custom_call.1} parent=11 // pred_fallthru
          _
        // Predicated region
        $region49: #{tpu_custom_call.1} parent=11 // pred_check
          %p324 = pneg %p256
        $region50: #{tpu_custom_call.1} parent=11 // pred_check_branch
          %326 = sbr.rel (%p324) target = $region52
        $region51: #{tpu_custom_call.1} parent=11 // pred_region
          _
        $region52: #{tpu_custom_call.1} parent=11 // pred_fallthru
          _
      $region12: #{tpu_custom_call.1} parent=5 // pred_fallthru
        _
      %p327 = scmp.lt.s32.totalorder %s20, 2
      // Predicated region
      $region53: #{tpu_custom_call.1} parent=5 // pred_check
        %p328 = pneg %p327
      $region54: #{tpu_custom_call.1} parent=5 // pred_check_branch
        %330 = sbr.rel (%p328) target = $region56
      $region55: #{tpu_custom_call.1} parent=5 // pred_region
        // Predicated region
        $region57: #{tpu_custom_call.1} parent=55 // pred_check
          %p331 = pneg %p40
        $region58: #{tpu_custom_call.1} parent=55 // pred_check_branch
          %333 = sbr.rel (%p331) target = $region60
        $region59: #{tpu_custom_call.1} parent=55 // pred_region
          %p334 = scmp.lt.s32.totalorder %s20, 1
          %s335 = scalar_select %p334, %s20, 1
          %s336 = smul.addr %s335, 4
          %s337 = smul.addr %s336, 8
          %s338 = scalar_lea.vmem %s0, %s337
        $region60: #{tpu_custom_call.1} parent=55 // pred_fallthru
          _
      $region56: #{tpu_custom_call.1} parent=5 // pred_fallthru
        _
      %p339 = scmp.le.s32.totalorder 1, %s20
      %p340 = scmp.lt.s32.totalorder %s20, 3
      %p341 = pnand %p339, %p340
      %p342 = pneg %p341
      // Predicated region
      $region61: #{tpu_custom_call.1} parent=5 // pred_check
        _
      $region62: #{tpu_custom_call.1} parent=5 // pred_check_branch
        %344 = sbr.rel (%p341) target = $region64
      $region63: #{tpu_custom_call.1} parent=5 // pred_region
        %s345 = ssub.s32 %s20, 1
        %p346 = scmp.lt.s32.totalorder %s25, 1
        %s347 = scalar_select %p346, %s25, 1
        %s348 = smul.addr %s347, 4
        %s349 = smul.addr %s348, 8
        %s350 = scalar_lea.vmem %s0, %s349
        %p351 = pneg %p46
        %p352 = pneg %p43
        %p353 = pneg %p67
        %p354 = pneg %p64
        %p355 = pneg %p88
        %p356 = pneg %p85
        %p357 = pneg %p109
        %p358 = pneg %p106
        %p359 = pneg %p130
        %p360 = pneg %p127
        %p361 = pneg %p151
        %p362 = pneg %p148
        %p363 = pneg %p172
        %p364 = pneg %p169
        %p365 = pneg %p193
        %p366 = pneg %p190
        %p367 = pneg %p214
        %p368 = pneg %p211
        %p369 = pneg %p235
        %p370 = pneg %p232
        %p371 = pneg %p256
        %p372 = pneg %p253
        %p373 = pneg %p282
        %p374 = pneg %p279
        %s375 = sand.u32 %s269, 1
        %s376 = scalar_lea.sflag [#allocation5], %s375
        %s377 = sand.u32 %s269, 1
        %s378 = smul.addr %s377, 4
        %s379 = scalar_lea.vmem [#allocation4], %s378
        %p380 = scmp.lt.s32.totalorder %s25, 1
        %s381 = scalar_select %p380, %s25, 1
        %s382 = smul.addr %s381, 4
        %s383 = smul.addr %s382, 8
        %s384 = scalar_lea.vmem %s0, %s383
        %v385 = vld [vmem:[%s384] sm:$0xff]
        %v386 = vld [vmem:[%s384 + $0x8] sm:$0xff]
        %v387 = vld [vmem:[%s384 + $0x10] sm:$0xff]
        %v388 = vld [vmem:[%s384 + $0x18] sm:$0xff]
        %vm389 = vcmask 73728
        %390 = vst.msk [vmem:[#allocation2] sm:$0x1] %vm389, 0.0
        %391 = vst.msk [vmem:[#allocation2 + $0x10] sm:$0x1] %vm389, 0.0
        %392 = vst.msk [vmem:[#allocation2 + $0x20] sm:$0x1] %vm389, 0.0
        %393 = vst.msk [vmem:[#allocation2 + $0x30] sm:$0x1] %vm389, 0.0
        %394 = vst.msk [vmem:[#allocation2 + $0x9] sm:$0x1] %vm389, 0.0
        %395 = vst.msk [vmem:[#allocation2 + $0x19] sm:$0x1] %vm389, 0.0
        %396 = vst.msk [vmem:[#allocation2 + $0x29] sm:$0x1] %vm389, 0.0
        %397 = vst.msk [vmem:[#allocation2 + $0x39] sm:$0x1] %vm389, 0.0
        %vm398 = vcmask 7168
        %399 = vst.msk [vmem:[#allocation2 + $0x1] sm:$0xff] %vm398, 0.0
        %400 = vst.msk [vmem:[#allocation2 + $0x11] sm:$0xff] %vm398, 0.0
        %401 = vst.msk [vmem:[#allocation2 + $0x21] sm:$0xff] %vm398, 0.0
        %402 = vst.msk [vmem:[#allocation2 + $0x31] sm:$0xff] %vm398, 0.0
        %vm403 = vcmask 80968
        %404 = vst.msk [vmem:[#allocation2 + $0x1] sm:$0xff] %vm403, 0.0
        %405 = vst.msk [vmem:[#allocation2 + $0x11] sm:$0xff] %vm403, 0.0
        %406 = vst.msk [vmem:[#allocation2 + $0x21] sm:$0xff] %vm403, 0.0
        %407 = vst.msk [vmem:[#allocation2 + $0x31] sm:$0xff] %vm403, 0.0
        %412 = vrot.lane.b32.xlu0 %v385, 1
        %v413 = vpop.permute.xlu0 %412
        %414 = vrot.lane.b32.xlu0 %v386, 1
        %v415 = vpop.permute.xlu0 %414
        %416 = vrot.lane.b32.xlu0 %v387, 1
        %v417 = vpop.permute.xlu0 %416
        %418 = vrot.lane.b32.xlu0 %v388, 1
        %v419 = vpop.permute.xlu0 %418
        %vm424 = vcmask 72712
        %425 = vst.msk [vmem:[#allocation2 + $0x1] sm:$0xff] %vm424, %v413
        %426 = vst.msk [vmem:[#allocation2 + $0x11] sm:$0xff] %vm424, %v415
        %427 = vst.msk [vmem:[#allocation2 + $0x21] sm:$0xff] %vm424, %v417
        %428 = vst.msk [vmem:[#allocation2 + $0x31] sm:$0xff] %vm424, %v419
        %v429 = vld [vmem:[#allocation2] sm:$0xff]
        %v430 = vld [vmem:[#allocation2 + $0x10] sm:$0xff]
        %v431 = vld [vmem:[#allocation2 + $0x20] sm:$0xff]
        %v432 = vld [vmem:[#allocation2 + $0x30] sm:$0xff]
        %v433 = vld [vmem:[%s1] sm:$0xff]
        %v434 = vld [vmem:[%s1 + $0x8] sm:$0x3]
        %v435 = vld [vmem:[#allocation2 + $0x1] sm:$0xff]
        %v436 = vld [vmem:[#allocation2 + $0x11] sm:$0xff]
        %v437 = vld [vmem:[#allocation2 + $0x21] sm:$0xff]
        %v438 = vld [vmem:[#allocation2 + $0x31] sm:$0xff]
        %s439 = scalar_lea.vmem %s1, 16
        %v440 = vld [vmem:[%s439] sm:$0xff]
        %v441 = vld [vmem:[%s439 + $0x8] sm:$0x3]
        %vm442 = vcmask 80896
        %v444 = vsel %vm442, %v435, 0
        %v447 = vsel %vm442, %v436, 0
        %v450 = vsel %vm442, %v437, 0
        %v453 = vsel %vm442, %v438, 0
        %vm455 = vcmask 1041408
        %v457 = vsel %vm455, %v441, 0
        %459 = vmatprep.subr.mxu0 0.0
        %460 = vmatpush1.msra.mxu0 %v440
        %461 = vmatprep.subr.mxu0 0.0
        %462 = vmatpush1.msra.mxu0 %v457
        %463 = vmatprep.subr.mxu0 0.0
        %464 = vmatpush1.msra.mxu0 0.0
        %465 = vmatprep.subr.mxu0 0.0
        %466 = vmatpush1.msra.mxu0 0.0
        %467 = vmatprep.subr.mxu0 0.0
        %468 = vmatpush1.msra.mxu0 0.0
        %469 = vmatprep.subr.mxu0 0.0
        %470 = vmatpush1.msra.mxu0 0.0
        %471 = vmatprep.subr.mxu0 0.0
        %472 = vmatpush1.msra.mxu0 0.0
        %473 = vmatprep.subr.mxu0 0.0
        %474 = vmatpush1.msra.mxu0 0.0
        %475 = vmatprep.subr.mxu0 0.0
        %476 = vmatpush1.msra.mxu0 0.0
        %477 = vmatprep.subr.mxu0 0.0
        %478 = vmatpush1.msra.mxu0 0.0
        %479 = vmatprep.subr.mxu0 0.0
        %480 = vmatpush1.msra.mxu0 0.0
        %481 = vmatprep.subr.mxu0 0.0
        %482 = vmatpush1.msra.mxu0 0.0
        %483 = vmatprep.subr.mxu0 0.0
        %484 = vmatpush1.msra.mxu0 0.0
        %485 = vmatprep.subr.mxu0 0.0
        %486 = vmatpush1.msra.mxu0 0.0
        %487 = vmatprep.subr.mxu0 0.0
        %488 = vmatpush1.msra.mxu0 0.0
        %489 = vmatprep.subr.mxu0 0.0
        %490 = vmatpush1.msra.mxu0 0.0
        %491 = vmatprep.subr.mxu0 0.0
        %492 = vmatpush1.msra.mxu0 0.0
        %493 = vmatprep.subr.mxu0 0.0
        %494 = vmatpush1.msra.mxu0 0.0
        %495 = vmatprep.subr.mxu0 0.0
        %496 = vmatpush1.msra.mxu0 0.0
        %497 = vmatprep.subr.mxu0 0.0
        %498 = vmatpush1.msra.mxu0 0.0
        %499 = vmatprep.subr.mxu0 0.0
        %500 = vmatpush1.msra.mxu0 0.0
        %501 = vmatprep.subr.mxu0 0.0
        %502 = vmatpush1.msra.mxu0 0.0
        %503 = vmatprep.subr.mxu0 0.0
        %504 = vmatpush1.msra.mxu0 0.0
        %505 = vmatprep.subr.mxu0 0.0
        %506 = vmatpush1.msra.mxu0 0.0
        %507 = vmatprep.subr.mxu0 0.0
        %508 = vmatpush1.msra.mxu0 0.0
        %509 = vmatprep.subr.mxu0 0.0
        %510 = vmatpush1.msra.mxu0 0.0
        %511 = vmatprep.subr.mxu0 0.0
        %512 = vmatpush1.msra.mxu0 0.0
        %513 = vmatprep.subr.mxu0 0.0
        %514 = vmatpush1.msra.mxu0 0.0
        %515 = vmatprep.subr.mxu0 0.0
        %516 = vmatpush1.msra.mxu0 0.0
        %517 = vmatprep.subr.mxu0 0.0
        %518 = vmatpush1.msra.mxu0 0.0
        %519 = vmatprep.subr.mxu0 0.0
        %520 = vmatpush1.msra.mxu0 0.0
        %521 = vmatprep.subr.mxu0 0.0
        %522 = vmatpush1.msra.mxu0 0.0
        %523 = vmatprep.mubr.f32.mxu0 0.0
        %524 = vmatmul.mubr.f32.gmra.mrb[0].mxu0 %v444
        %v525 = vpop.f32.mrb[0].mxu0
        %v526 = vadd.f32 0.0, %v525
        %v527 = vpop.f32.mrb[0].mxu0
        %528 = vmatprep.mubr.f32.mxu0 0.0
        %529 = vmatmul.mubr.f32.gmra.mrb[0].mxu0 %v447
        %v530 = vpop.f32.mrb[0].mxu0
        %v531 = vadd.f32 0.0, %v530
        %v532 = vpop.f32.mrb[0].mxu0
        %533 = vmatprep.mubr.f32.mxu0 0.0
        %534 = vmatmul.mubr.f32.gmra.mrb[0].mxu0 %v450
        %v535 = vpop.f32.mrb[0].mxu0
        %v536 = vadd.f32 0.0, %v535
        %v537 = vpop.f32.mrb[0].mxu0
        %538 = vmatprep.mubr.f32.mxu0 0.0
        %539 = vmatmul.mubr.f32.gmra.mrb[0].mxu0 %v453
        %v540 = vpop.f32.mrb[0].mxu0
        %v541 = vadd.f32 0.0, %v540
        %v542 = vpop.f32.mrb[0].mxu0
        %543 = vdwg.mxu0
        %v545 = vsel %vm442, %v429, 0
        %v548 = vsel %vm442, %v430, 0
        %v551 = vsel %vm442, %v431, 0
        %v554 = vsel %vm442, %v432, 0
        %v557 = vsel %vm455, %v434, 0
        %559 = vmatprep.subr.mxu0 0.0
        %560 = vmatpush1.msra.mxu0 %v433
        %561 = vmatprep.subr.mxu0 0.0
        %562 = vmatpush1.msra.mxu0 %v557
        %563 = vmatprep.subr.mxu0 0.0
        %564 = vmatpush1.msra.mxu0 0.0
        %565 = vmatprep.subr.mxu0 0.0
        %566 = vmatpush1.msra.mxu0 0.0
        %567 = vmatprep.subr.mxu0 0.0
        %568 = vmatpush1.msra.mxu0 0.0
        %569 = vmatprep.subr.mxu0 0.0
        %570 = vmatpush1.msra.mxu0 0.0
        %571 = vmatprep.subr.mxu0 0.0
        %572 = vmatpush1.msra.mxu0 0.0
        %573 = vmatprep.subr.mxu0 0.0
        %574 = vmatpush1.msra.mxu0 0.0
        %575 = vmatprep.subr.mxu0 0.0
        %576 = vmatpush1.msra.mxu0 0.0
        %577 = vmatprep.subr.mxu0 0.0
        %578 = vmatpush1.msra.mxu0 0.0
        %579 = vmatprep.subr.mxu0 0.0
        %580 = vmatpush1.msra.mxu0 0.0
        %581 = vmatprep.subr.mxu0 0.0
        %582 = vmatpush1.msra.mxu0 0.0
        %583 = vmatprep.subr.mxu0 0.0
        %584 = vmatpush1.msra.mxu0 0.0
        %585 = vmatprep.subr.mxu0 0.0
        %586 = vmatpush1.msra.mxu0 0.0
        %587 = vmatprep.subr.mxu0 0.0
        %588 = vmatpush1.msra.mxu0 0.0
        %589 = vmatprep.subr.mxu0 0.0
        %590 = vmatpush1.msra.mxu0 0.0
        %591 = vmatprep.subr.mxu0 0.0
        %592 = vmatpush1.msra.mxu0 0.0
        %593 = vmatprep.subr.mxu0 0.0
        %594 = vmatpush1.msra.mxu0 0.0
        %595 = vmatprep.subr.mxu0 0.0
        %596 = vmatpush1.msra.mxu0 0.0
        %597 = vmatprep.subr.mxu0 0.0
        %598 = vmatpush1.msra.mxu0 0.0
        %599 = vmatprep.subr.mxu0 0.0
        %600 = vmatpush1.msra.mxu0 0.0
        %601 = vmatprep.subr.mxu0 0.0
        %602 = vmatpush1.msra.mxu0 0.0
        %603 = vmatprep.subr.mxu0 0.0
        %604 = vmatpush1.msra.mxu0 0.0
        %605 = vmatprep.subr.mxu0 0.0
        %606 = vmatpush1.msra.mxu0 0.0
        %607 = vmatprep.subr.mxu0 0.0
        %608 = vmatpush1.msra.mxu0 0.0
        %609 = vmatprep.subr.mxu0 0.0
        %610 = vmatpush1.msra.mxu0 0.0
        %611 = vmatprep.subr.mxu0 0.0
        %612 = vmatpush1.msra.mxu0 0.0
        %613 = vmatprep.subr.mxu0 0.0
        %614 = vmatpush1.msra.mxu0 0.0
        %615 = vmatprep.subr.mxu0 0.0
        %616 = vmatpush1.msra.mxu0 0.0
        %617 = vmatprep.subr.mxu0 0.0
        %618 = vmatpush1.msra.mxu0 0.0
        %619 = vmatprep.subr.mxu0 0.0
        %620 = vmatpush1.msra.mxu0 0.0
        %621 = vmatprep.subr.mxu0 0.0
        %622 = vmatpush1.msra.mxu0 0.0
        %623 = vmatprep.mubr.f32.mxu0 0.0
        %624 = vmatmul.mubr.f32.gmra.mrb[0].mxu0 %v545
        %v625 = vpop.f32.mrb[0].mxu0
        %v626 = vadd.f32 %v526, %v625
        %v627 = vpop.f32.mrb[0].mxu0
        %628 = vmatprep.mubr.f32.mxu0 0.0
        %629 = vmatmul.mubr.f32.gmra.mrb[0].mxu0 %v548
        %v630 = vpop.f32.mrb[0].mxu0
        %v631 = vadd.f32 %v531, %v630
        %v632 = vpop.f32.mrb[0].mxu0
        %633 = vmatprep.mubr.f32.mxu0 0.0
        %634 = vmatmul.mubr.f32.gmra.mrb[0].mxu0 %v551
        %v635 = vpop.f32.mrb[0].mxu0
        %v636 = vadd.f32 %v536, %v635
        %v637 = vpop.f32.mrb[0].mxu0
        %638 = vmatprep.mubr.f32.mxu0 0.0
        %639 = vmatmul.mubr.f32.gmra.mrb[0].mxu0 %v554
        %v640 = vpop.f32.mrb[0].mxu0
        %v641 = vadd.f32 %v541, %v640
        %v642 = vpop.f32.mrb[0].mxu0
        %643 = vdwg.mxu0
        %v644 = vld [vmem:[#allocation2 + $0x2] sm:$0xff]
        %v645 = vld [vmem:[#allocation2 + $0x12] sm:$0xff]
        %v646 = vld [vmem:[#allocation2 + $0x22] sm:$0xff]
        %v647 = vld [vmem:[#allocation2 + $0x32] sm:$0xff]
        %s648 = scalar_lea.vmem %s1, 32
        %v649 = vld [vmem:[%s648] sm:$0xff]
        %v650 = vld [vmem:[%s648 + $0x8] sm:$0x3]
        %v652 = vsel %vm442, %v644, 0
        %v655 = vsel %vm442, %v645, 0
        %v658 = vsel %vm442, %v646, 0
        %v661 = vsel %vm442, %v647, 0
        %v664 = vsel %vm455, %v650, 0
        %666 = vmatprep.subr.mxu0 0.0
        %667 = vmatpush1.msra.mxu0 %v649
        %668 = vmatprep.subr.mxu0 0.0
        %669 = vmatpush1.msra.mxu0 %v664
        %670 = vmatprep.subr.mxu0 0.0
        %671 = vmatpush1.msra.mxu0 0.0
        %672 = vmatprep.subr.mxu0 0.0
        %673 = vmatpush1.msra.mxu0 0.0
        %674 = vmatprep.subr.mxu0 0.0
        %675 = vmatpush1.msra.mxu0 0.0
        %676 = vmatprep.subr.mxu0 0.0
        %677 = vmatpush1.msra.mxu0 0.0
        %678 = vmatprep.subr.mxu0 0.0
        %679 = vmatpush1.msra.mxu0 0.0
        %680 = vmatprep.subr.mxu0 0.0
        %681 = vmatpush1.msra.mxu0 0.0
        %682 = vmatprep.subr.mxu0 0.0
        %683 = vmatpush1.msra.mxu0 0.0
        %684 = vmatprep.subr.mxu0 0.0
        %685 = vmatpush1.msra.mxu0 0.0
        %686 = vmatprep.subr.mxu0 0.0
        %687 = vmatpush1.msra.mxu0 0.0
        %688 = vmatprep.subr.mxu0 0.0
        %689 = vmatpush1.msra.mxu0 0.0
        %690 = vmatprep.subr.mxu0 0.0
        %691 = vmatpush1.msra.mxu0 0.0
        %692 = vmatprep.subr.mxu0 0.0
        %693 = vmatpush1.msra.mxu0 0.0
        %694 = vmatprep.subr.mxu0 0.0
        %695 = vmatpush1.msra.mxu0 0.0
        %696 = vmatprep.subr.mxu0 0.0
        %697 = vmatpush1.msra.mxu0 0.0
        %698 = vmatprep.subr.mxu0 0.0
        %699 = vmatpush1.msra.mxu0 0.0
        %700 = vmatprep.subr.mxu0 0.0
        %701 = vmatpush1.msra.mxu0 0.0
        %702 = vmatprep.subr.mxu0 0.0
        %703 = vmatpush1.msra.mxu0 0.0
        %704 = vmatprep.subr.mxu0 0.0
        %705 = vmatpush1.msra.mxu0 0.0
        %706 = vmatprep.subr.mxu0 0.0
        %707 = vmatpush1.msra.mxu0 0.0
        %708 = vmatprep.subr.mxu0 0.0
        %709 = vmatpush1.msra.mxu0 0.0
        %710 = vmatprep.subr.mxu0 0.0
        %711 = vmatpush1.msra.mxu0 0.0
        %712 = vmatprep.subr.mxu0 0.0
        %713 = vmatpush1.msra.mxu0 0.0
        %714 = vmatprep.subr.mxu0 0.0
        %715 = vmatpush1.msra.mxu0 0.0
        %716 = vmatprep.subr.mxu0 0.0
        %717 = vmatpush1.msra.mxu0 0.0
        %718 = vmatprep.subr.mxu0 0.0
        %719 = vmatpush1.msra.mxu0 0.0
        %720 = vmatprep.subr.mxu0 0.0
        %721 = vmatpush1.msra.mxu0 0.0
        %722 = vmatprep.subr.mxu0 0.0
        %723 = vmatpush1.msra.mxu0 0.0
        %724 = vmatprep.subr.mxu0 0.0
        %725 = vmatpush1.msra.mxu0 0.0
        %726 = vmatprep.subr.mxu0 0.0
        %727 = vmatpush1.msra.mxu0 0.0
        %728 = vmatprep.subr.mxu0 0.0
        %729 = vmatpush1.msra.mxu0 0.0
        %730 = vmatprep.mubr.f32.mxu0 0.0
        %731 = vmatmul.mubr.f32.gmra.mrb[0].mxu0 %v652
        %v732 = vpop.f32.mrb[0].mxu0
        %v733 = vadd.f32 0.0, %v732
        %v734 = vpop.f32.mrb[0].mxu0
        %735 = vmatprep.mubr.f32.mxu0 0.0
        %736 = vmatmul.mubr.f32.gmra.mrb[0].mxu0 %v655
        %v737 = vpop.f32.mrb[0].mxu0
        %v738 = vadd.f32 0.0, %v737
        %v739 = vpop.f32.mrb[0].mxu0
        %740 = vmatprep.mubr.f32.mxu0 0.0
        %741 = vmatmul.mubr.f32.gmra.mrb[0].mxu0 %v658
        %v742 = vpop.f32.mrb[0].mxu0
        %v743 = vadd.f32 0.0, %v742
        %v744 = vpop.f32.mrb[0].mxu0
        %745 = vmatprep.mubr.f32.mxu0 0.0
        %746 = vmatmul.mubr.f32.gmra.mrb[0].mxu0 %v661
        %v747 = vpop.f32.mrb[0].mxu0
        %v748 = vadd.f32 0.0, %v747
        %v749 = vpop.f32.mrb[0].mxu0
        %750 = vdwg.mxu0
        %v751 = vadd.f32 %v626, %v733
        %v752 = vadd.f32 %v631, %v738
        %v753 = vadd.f32 %v636, %v743
        %v754 = vadd.f32 %v641, %v748
        %v755 = vld [vmem:[%s2] sm:$0x1]
        %v757 = vlaneseq
        %v758 = vshrl.u32 %v757, 7
        %v759 = vsub.s32 0, %v758
        %v760 = vrot.slane %v755, %v759
        %v762 = vadd.f32 %v751, %v760
        %v763 = vadd.f32 %v752, %v760
        %v764 = vadd.f32 %v753, %v760
        %v765 = vadd.f32 %v754, %v760
        %v766 = vtanh.pop %v762
        %v767 = vtanh.pop %v763
        %v768 = vtanh.pop %v764
        %v769 = vtanh.pop %v765
        %vm770 = vcmask 647168
        %771 = vst.msk [vmem:[#allocation2] sm:$0x1] %vm770, 0.0
        %772 = vst.msk [vmem:[#allocation2 + $0x10] sm:$0x1] %vm770, 0.0
        %773 = vst.msk [vmem:[#allocation2 + $0x20] sm:$0x1] %vm770, 0.0
        %774 = vst.msk [vmem:[#allocation2 + $0x30] sm:$0x1] %vm770, 0.0
        %775 = vst.msk [vmem:[#allocation2 + $0x9] sm:$0x1] %vm770, 0.0
        %776 = vst.msk [vmem:[#allocation2 + $0x19] sm:$0x1] %vm770, 0.0
        %777 = vst.msk [vmem:[#allocation2 + $0x29] sm:$0x1] %vm770, 0.0
        %778 = vst.msk [vmem:[#allocation2 + $0x39] sm:$0x1] %vm770, 0.0
        %vm779 = vcmask 64512
        %780 = vst.msk [vmem:[#allocation2 + $0x1] sm:$0xff] %vm779, 0.0
        %781 = vst.msk [vmem:[#allocation2 + $0x11] sm:$0xff] %vm779, 0.0
        %782 = vst.msk [vmem:[#allocation2 + $0x21] sm:$0xff] %vm779, 0.0
        %783 = vst.msk [vmem:[#allocation2 + $0x31] sm:$0xff] %vm779, 0.0
        %vm784 = vcmask 654912
        %785 = vst.msk [vmem:[#allocation2 + $0x1] sm:$0xff] %vm784, 0.0
        %786 = vst.msk [vmem:[#allocation2 + $0x11] sm:$0xff] %vm784, 0.0
        %787 = vst.msk [vmem:[#allocation2 + $0x21] sm:$0xff] %vm784, 0.0
        %788 = vst.msk [vmem:[#allocation2 + $0x31] sm:$0xff] %vm784, 0.0
        %793 = vrot.lane.b32.xlu0 %v766, 8
        %v794 = vpop.permute.xlu0 %793
        %795 = vrot.lane.b32.xlu0 %v767, 8
        %v796 = vpop.permute.xlu0 %795
        %797 = vrot.lane.b32.xlu0 %v768, 8
        %v798 = vpop.permute.xlu0 %797
        %799 = vrot.lane.b32.xlu0 %v769, 8
        %v800 = vpop.permute.xlu0 %799
        %vm805 = vcmask 588864
        %806 = vst.msk [vmem:[#allocation2 + $0x1] sm:$0xff] %vm805, %v794
        %807 = vst.msk [vmem:[#allocation2 + $0x11] sm:$0xff] %vm805, %v796
        %808 = vst.msk [vmem:[#allocation2 + $0x21] sm:$0xff] %vm805, %v798
        %809 = vst.msk [vmem:[#allocation2 + $0x31] sm:$0xff] %vm805, %v800
        %v810 = vld [vmem:[#allocation2] sm:$0xff]
        %v811 = vld [vmem:[#allocation2 + $0x10] sm:$0xff]
        %v812 = vld [vmem:[#allocation2 + $0x20] sm:$0xff]
        %v813 = vld [vmem:[#allocation2 + $0x30] sm:$0xff]
        %v814 = vld [vmem:[%s3] sm:$0xff]
        %v815 = vld [vmem:[%s3 + $0x8] sm:$0xff]
        %v816 = vld [vmem:[%s3 + $0x10] sm:$0xff]
        %v817 = vld [vmem:[%s3 + $0x18] sm:$0xff]
        %v818 = vld [vmem:[%s3 + $0x20] sm:$0xff]
        %v819 = vld [vmem:[%s3 + $0x28] sm:$0xff]
        %v820 = vld [vmem:[%s3 + $0x30] sm:$0xff]
        %v821 = vld [vmem:[%s3 + $0x38] sm:$0xff]
        %v822 = vld [vmem:[%s3 + $0x40] sm:$0xff]
        %v823 = vld [vmem:[%s3 + $0x48] sm:$0xff]
        %v824 = vld [vmem:[#allocation2 + $0x1] sm:$0xff]
        %v825 = vld [vmem:[#allocation2 + $0x11] sm:$0xff]
        %v826 = vld [vmem:[#allocation2 + $0x21] sm:$0xff]
        %v827 = vld [vmem:[#allocation2 + $0x31] sm:$0xff]
        %s828 = scalar_lea.vmem %s3, 80
        %v829 = vld [vmem:[%s828] sm:$0xff]
        %v830 = vld [vmem:[%s828 + $0x8] sm:$0xff]
        %v831 = vld [vmem:[%s828 + $0x10] sm:$0xff]
        %v832 = vld [vmem:[%s828 + $0x18] sm:$0xff]
        %v833 = vld [vmem:[%s828 + $0x20] sm:$0xff]
        %v834 = vld [vmem:[%s828 + $0x28] sm:$0xff]
        %v835 = vld [vmem:[%s828 + $0x30] sm:$0xff]
        %v836 = vld [vmem:[%s828 + $0x38] sm:$0xff]
        %v837 = vld [vmem:[%s828 + $0x40] sm:$0xff]
        %v838 = vld [vmem:[%s828 + $0x48] sm:$0xff]
        %vm839 = vcmask 654336
        %v841 = vsel %vm839, %v824, 0
        %v844 = vsel %vm839, %v825, 0
        %v847 = vsel %vm839, %v826, 0
        %v850 = vsel %vm839, %v827, 0
        %852 = vmatprep.subr.mxu0 0.0
        %853 = vmatpush1.msra.mxu0 %v829
        %854 = vmatprep.subr.mxu0 0.0
        %855 = vmatpush1.msra.mxu0 %v830
        %856 = vmatprep.subr.mxu0 0.0
        %857 = vmatpush1.msra.mxu0 %v831
        %858 = vmatprep.subr.mxu0 0.0
        %859 = vmatpush1.msra.mxu0 %v832
        %860 = vmatprep.subr.mxu0 0.0
        %861 = vmatpush1.msra.mxu0 %v833
        %862 = vmatprep.subr.mxu0 0.0
        %863 = vmatpush1.msra.mxu0 %v834
        %864 = vmatprep.subr.mxu0 0.0
        %865 = vmatpush1.msra.mxu0 %v835
        %866 = vmatprep.subr.mxu0 0.0
        %867 = vmatpush1.msra.mxu0 %v836
        %868 = vmatprep.subr.mxu0 0.0
        %869 = vmatpush1.msra.mxu0 %v837
        %870 = vmatprep.subr.mxu0 0.0
        %871 = vmatpush1.msra.mxu0 %v838
        %872 = vmatprep.subr.mxu0 0.0
        %873 = vmatpush1.msra.mxu0 0.0
        %874 = vmatprep.subr.mxu0 0.0
        %875 = vmatpush1.msra.mxu0 0.0
        %876 = vmatprep.subr.mxu0 0.0
        %877 = vmatpush1.msra.mxu0 0.0
        %878 = vmatprep.subr.mxu0 0.0
        %879 = vmatpush1.msra.mxu0 0.0
        %880 = vmatprep.subr.mxu0 0.0
        %881 = vmatpush1.msra.mxu0 0.0
        %882 = vmatprep.subr.mxu0 0.0
        %883 = vmatpush1.msra.mxu0 0.0
        %884 = vmatprep.subr.mxu0 0.0
        %885 = vmatpush1.msra.mxu0 0.0
        %886 = vmatprep.subr.mxu0 0.0
        %887 = vmatpush1.msra.mxu0 0.0
        %888 = vmatprep.subr.mxu0 0.0
        %889 = vmatpush1.msra.mxu0 0.0
        %890 = vmatprep.subr.mxu0 0.0
        %891 = vmatpush1.msra.mxu0 0.0
        %892 = vmatprep.subr.mxu0 0.0
        %893 = vmatpush1.msra.mxu0 0.0
        %894 = vmatprep.subr.mxu0 0.0
        %895 = vmatpush1.msra.mxu0 0.0
        %896 = vmatprep.subr.mxu0 0.0
        %897 = vmatpush1.msra.mxu0 0.0
        %898 = vmatprep.subr.mxu0 0.0
        %899 = vmatpush1.msra.mxu0 0.0
        %900 = vmatprep.subr.mxu0 0.0
        %901 = vmatpush1.msra.mxu0 0.0
        %902 = vmatprep.subr.mxu0 0.0
        %903 = vmatpush1.msra.mxu0 0.0
        %904 = vmatprep.subr.mxu0 0.0
        %905 = vmatpush1.msra.mxu0 0.0
        %906 = vmatprep.subr.mxu0 0.0
        %907 = vmatpush1.msra.mxu0 0.0
        %908 = vmatprep.subr.mxu0 0.0
        %909 = vmatpush1.msra.mxu0 0.0
        %910 = vmatprep.subr.mxu0 0.0
        %911 = vmatpush1.msra.mxu0 0.0
        %912 = vmatprep.subr.mxu0 0.0
        %913 = vmatpush1.msra.mxu0 0.0
        %914 = vmatprep.subr.mxu0 0.0
        %915 = vmatpush1.msra.mxu0 0.0
        %916 = vmatprep.mubr.f32.mxu0 0.0
        %917 = vmatmul.mubr.f32.gmra.mrb[0].mxu0 %v841
        %v918 = vpop.f32.mrb[0].mxu0
        %v919 = vadd.f32 0.0, %v918
        %v920 = vpop.f32.mrb[0].mxu0
        %921 = vmatprep.mubr.f32.mxu0 0.0
        %922 = vmatmul.mubr.f32.gmra.mrb[0].mxu0 %v844
        %v923 = vpop.f32.mrb[0].mxu0
        %v924 = vadd.f32 0.0, %v923
        %v925 = vpop.f32.mrb[0].mxu0
        %926 = vmatprep.mubr.f32.mxu0 0.0
        %927 = vmatmul.mubr.f32.gmra.mrb[0].mxu0 %v847
        %v928 = vpop.f32.mrb[0].mxu0
        %v929 = vadd.f32 0.0, %v928
        %v930 = vpop.f32.mrb[0].mxu0
        %931 = vmatprep.mubr.f32.mxu0 0.0
        %932 = vmatmul.mubr.f32.gmra.mrb[0].mxu0 %v850
        %v933 = vpop.f32.mrb[0].mxu0
        %v934 = vadd.f32 0.0, %v933
        %v935 = vpop.f32.mrb[0].mxu0
        %936 = vdwg.mxu0
        %v938 = vsel %vm839, %v810, 0
        %v941 = vsel %vm839, %v811, 0
        %v944 = vsel %vm839, %v812, 0
        %v947 = vsel %vm839, %v813, 0
        %949 = vmatprep.subr.mxu0 0.0
        %950 = vmatpush1.msra.mxu0 %v814
        %951 = vmatprep.subr.mxu0 0.0
        %952 = vmatpush1.msra.mxu0 %v815
        %953 = vmatprep.subr.mxu0 0.0
        %954 = vmatpush1.msra.mxu0 %v816
        %955 = vmatprep.subr.mxu0 0.0
        %956 = vmatpush1.msra.mxu0 %v817
        %957 = vmatprep.subr.mxu0 0.0
        %958 = vmatpush1.msra.mxu0 %v818
        %959 = vmatprep.subr.mxu0 0.0
        %960 = vmatpush1.msra.mxu0 %v819
        %961 = vmatprep.subr.mxu0 0.0
        %962 = vmatpush1.msra.mxu0 %v820
        %963 = vmatprep.subr.mxu0 0.0
        %964 = vmatpush1.msra.mxu0 %v821
        %965 = vmatprep.subr.mxu0 0.0
        %966 = vmatpush1.msra.mxu0 %v822
        %967 = vmatprep.subr.mxu0 0.0
        %968 = vmatpush1.msra.mxu0 %v823
        %969 = vmatprep.subr.mxu0 0.0
        %970 = vmatpush1.msra.mxu0 0.0
        %971 = vmatprep.subr.mxu0 0.0
        %972 = vmatpush1.msra.mxu0 0.0
        %973 = vmatprep.subr.mxu0 0.0
        %974 = vmatpush1.msra.mxu0 0.0
        %975 = vmatprep.subr.mxu0 0.0
        %976 = vmatpush1.msra.mxu0 0.0
        %977 = vmatprep.subr.mxu0 0.0
        %978 = vmatpush1.msra.mxu0 0.0
        %979 = vmatprep.subr.mxu0 0.0
        %980 = vmatpush1.msra.mxu0 0.0
        %981 = vmatprep.subr.mxu0 0.0
        %982 = vmatpush1.msra.mxu0 0.0
        %983 = vmatprep.subr.mxu0 0.0
        %984 = vmatpush1.msra.mxu0 0.0
        %985 = vmatprep.subr.mxu0 0.0
        %986 = vmatpush1.msra.mxu0 0.0
        %987 = vmatprep.subr.mxu0 0.0
        %988 = vmatpush1.msra.mxu0 0.0
        %989 = vmatprep.subr.mxu0 0.0
        %990 = vmatpush1.msra.mxu0 0.0
        %991 = vmatprep.subr.mxu0 0.0
        %992 = vmatpush1.msra.mxu0 0.0
        %993 = vmatprep.subr.mxu0 0.0
        %994 = vmatpush1.msra.mxu0 0.0
        %995 = vmatprep.subr.mxu0 0.0
        %996 = vmatpush1.msra.mxu0 0.0
        %997 = vmatprep.subr.mxu0 0.0
        %998 = vmatpush1.msra.mxu0 0.0
        %999 = vmatprep.subr.mxu0 0.0
        %1000 = vmatpush1.msra.mxu0 0.0
        %1001 = vmatprep.subr.mxu0 0.0
        %1002 = vmatpush1.msra.mxu0 0.0
        %1003 = vmatprep.subr.mxu0 0.0
        %1004 = vmatpush1.msra.mxu0 0.0
        %1005 = vmatprep.subr.mxu0 0.0
        %1006 = vmatpush1.msra.mxu0 0.0
        %1007 = vmatprep.subr.mxu0 0.0
        %1008 = vmatpush1.msra.mxu0 0.0
        %1009 = vmatprep.subr.mxu0 0.0
        %1010 = vmatpush1.msra.mxu0 0.0
        %1011 = vmatprep.subr.mxu0 0.0
        %1012 = vmatpush1.msra.mxu0 0.0
        %1013 = vmatprep.mubr.f32.mxu0 0.0
        %1014 = vmatmul.mubr.f32.gmra.mrb[0].mxu0 %v938
        %v1015 = vpop.f32.mrb[0].mxu0
        %v1016 = vadd.f32 %v919, %v1015
        %v1017 = vpop.f32.mrb[0].mxu0
        %1018 = vmatprep.mubr.f32.mxu0 0.0
        %1019 = vmatmul.mubr.f32.gmra.mrb[0].mxu0 %v941
        %v1020 = vpop.f32.mrb[0].mxu0
        %v1021 = vadd.f32 %v924, %v1020
        %v1022 = vpop.f32.mrb[0].mxu0
        %1023 = vmatprep.mubr.f32.mxu0 0.0
        %1024 = vmatmul.mubr.f32.gmra.mrb[0].mxu0 %v944
        %v1025 = vpop.f32.mrb[0].mxu0
        %v1026 = vadd.f32 %v929, %v1025
        %v1027 = vpop.f32.mrb[0].mxu0
        %1028 = vmatprep.mubr.f32.mxu0 0.0
        %1029 = vmatmul.mubr.f32.gmra.mrb[0].mxu0 %v947
        %v1030 = vpop.f32.mrb[0].mxu0
        %v1031 = vadd.f32 %v934, %v1030
        %v1032 = vpop.f32.mrb[0].mxu0
        %1033 = vdwg.mxu0
        %v1034 = vld [vmem:[#allocation2 + $0x2] sm:$0xff]
        %v1035 = vld [vmem:[#allocation2 + $0x12] sm:$0xff]
        %v1036 = vld [vmem:[#allocation2 + $0x22] sm:$0xff]
        %v1037 = vld [vmem:[#allocation2 + $0x32] sm:$0xff]
        %s1038 = scalar_lea.vmem %s3, 160
        %v1039 = vld [vmem:[%s1038] sm:$0xff]
        %v1040 = vld [vmem:[%s1038 + $0x8] sm:$0xff]
        %v1041 = vld [vmem:[%s1038 + $0x10] sm:$0xff]
        %v1042 = vld [vmem:[%s1038 + $0x18] sm:$0xff]
        %v1043 = vld [vmem:[%s1038 + $0x20] sm:$0xff]
        %v1044 = vld [vmem:[%s1038 + $0x28] sm:$0xff]
        %v1045 = vld [vmem:[%s1038 + $0x30] sm:$0xff]
        %v1046 = vld [vmem:[%s1038 + $0x38] sm:$0xff]
        %v1047 = vld [vmem:[%s1038 + $0x40] sm:$0xff]
        %v1048 = vld [vmem:[%s1038 + $0x48] sm:$0xff]
        %v1050 = vsel %vm839, %v1034, 0
        %v1053 = vsel %vm839, %v1035, 0
        %v1056 = vsel %vm839, %v1036, 0
        %v1059 = vsel %vm839, %v1037, 0
        %1061 = vmatprep.subr.mxu0 0.0
        %1062 = vmatpush1.msra.mxu0 %v1039
        %1063 = vmatprep.subr.mxu0 0.0
        %1064 = vmatpush1.msra.mxu0 %v1040
        %1065 = vmatprep.subr.mxu0 0.0
        %1066 = vmatpush1.msra.mxu0 %v1041
        %1067 = vmatprep.subr.mxu0 0.0
        %1068 = vmatpush1.msra.mxu0 %v1042
        %1069 = vmatprep.subr.mxu0 0.0
        %1070 = vmatpush1.msra.mxu0 %v1043
        %1071 = vmatprep.subr.mxu0 0.0
        %1072 = vmatpush1.msra.mxu0 %v1044
        %1073 = vmatprep.subr.mxu0 0.0
        %1074 = vmatpush1.msra.mxu0 %v1045
        %1075 = vmatprep.subr.mxu0 0.0
        %1076 = vmatpush1.msra.mxu0 %v1046
        %1077 = vmatprep.subr.mxu0 0.0
        %1078 = vmatpush1.msra.mxu0 %v1047
        %1079 = vmatprep.subr.mxu0 0.0
        %1080 = vmatpush1.msra.mxu0 %v1048
        %1081 = vmatprep.subr.mxu0 0.0
        %1082 = vmatpush1.msra.mxu0 0.0
        %1083 = vmatprep.subr.mxu0 0.0
        %1084 = vmatpush1.msra.mxu0 0.0
        %1085 = vmatprep.subr.mxu0 0.0
        %1086 = vmatpush1.msra.mxu0 0.0
        %1087 = vmatprep.subr.mxu0 0.0
        %1088 = vmatpush1.msra.mxu0 0.0
        %1089 = vmatprep.subr.mxu0 0.0
        %1090 = vmatpush1.msra.mxu0 0.0
        %1091 = vmatprep.subr.mxu0 0.0
        %1092 = vmatpush1.msra.mxu0 0.0
        %1093 = vmatprep.subr.mxu0 0.0
        %1094 = vmatpush1.msra.mxu0 0.0
        %1095 = vmatprep.subr.mxu0 0.0
        %1096 = vmatpush1.msra.mxu0 0.0
        %1097 = vmatprep.subr.mxu0 0.0
        %1098 = vmatpush1.msra.mxu0 0.0
        %1099 = vmatprep.subr.mxu0 0.0
        %1100 = vmatpush1.msra.mxu0 0.0
        %1101 = vmatprep.subr.mxu0 0.0
        %1102 = vmatpush1.msra.mxu0 0.0
        %1103 = vmatprep.subr.mxu0 0.0
        %1104 = vmatpush1.msra.mxu0 0.0
        %1105 = vmatprep.subr.mxu0 0.0
        %1106 = vmatpush1.msra.mxu0 0.0
        %1107 = vmatprep.subr.mxu0 0.0
        %1108 = vmatpush1.msra.mxu0 0.0
        %1109 = vmatprep.subr.mxu0 0.0
        %1110 = vmatpush1.msra.mxu0 0.0
        %1111 = vmatprep.subr.mxu0 0.0
        %1112 = vmatpush1.msra.mxu0 0.0
        %1113 = vmatprep.subr.mxu0 0.0
        %1114 = vmatpush1.msra.mxu0 0.0
        %1115 = vmatprep.subr.mxu0 0.0
        %1116 = vmatpush1.msra.mxu0 0.0
        %1117 = vmatprep.subr.mxu0 0.0
        %1118 = vmatpush1.msra.mxu0 0.0
        %1119 = vmatprep.subr.mxu0 0.0
        %1120 = vmatpush1.msra.mxu0 0.0
        %1121 = vmatprep.subr.mxu0 0.0
        %1122 = vmatpush1.msra.mxu0 0.0
        %1123 = vmatprep.subr.mxu0 0.0
        %1124 = vmatpush1.msra.mxu0 0.0
        %1125 = vmatprep.mubr.f32.mxu0 0.0
        %1126 = vmatmul.mubr.f32.gmra.mrb[0].mxu0 %v1050
        %v1127 = vpop.f32.mrb[0].mxu0
        %v1128 = vadd.f32 0.0, %v1127
        %v1129 = vpop.f32.mrb[0].mxu0
        %1130 = vmatprep.mubr.f32.mxu0 0.0
        %1131 = vmatmul.mubr.f32.gmra.mrb[0].mxu0 %v1053
        %v1132 = vpop.f32.mrb[0].mxu0
        %v1133 = vadd.f32 0.0, %v1132
        %v1134 = vpop.f32.mrb[0].mxu0
        %1135 = vmatprep.mubr.f32.mxu0 0.0
        %1136 = vmatmul.mubr.f32.gmra.mrb[0].mxu0 %v1056
        %v1137 = vpop.f32.mrb[0].mxu0
        %v1138 = vadd.f32 0.0, %v1137
        %v1139 = vpop.f32.mrb[0].mxu0
        %1140 = vmatprep.mubr.f32.mxu0 0.0
        %1141 = vmatmul.mubr.f32.gmra.mrb[0].mxu0 %v1059
        %v1142 = vpop.f32.mrb[0].mxu0
        %v1143 = vadd.f32 0.0, %v1142
        %v1144 = vpop.f32.mrb[0].mxu0
        %1145 = vdwg.mxu0
        %v1146 = vadd.f32 %v1016, %v1128
        %v1147 = vadd.f32 %v1021, %v1133
        %v1148 = vadd.f32 %v1026, %v1138
        %v1149 = vadd.f32 %v1031, %v1143
        %v1150 = vld [vmem:[%s4] sm:$0x1]
        %v1152 = vlaneseq
        %v1153 = vshrl.u32 %v1152, 7
        %v1154 = vsub.s32 0, %v1153
        %v1155 = vrot.slane %v1150, %v1154
        %v1157 = vadd.f32 %v1146, %v1155
        %v1158 = vadd.f32 %v1147, %v1155
        %v1159 = vadd.f32 %v1148, %v1155
        %v1160 = vadd.f32 %v1149, %v1155
        %v1161 = vtanh.pop %v1157
        %v1162 = vtanh.pop %v1158
        %v1163 = vtanh.pop %v1159
        %v1164 = vtanh.pop %v1160
        %v1169 = vrot.slane %v1162, 7
        %vm1170 = vcmask 1041409
        %v1171 = vsel %vm1170, %v1169, %v1161
        %vm1172 = vcmask 1045509
        %v1173 = vsel %vm1172, %v1169, %v1171
        %v1174 = vrot.slane %v1163, 6
        %vm1175 = vcmask 1042434
        %v1176 = vsel %vm1175, %v1174, %v1173
        %vm1177 = vcmask 1046534
        %v1178 = vsel %vm1177, %v1174, %v1176
        %v1179 = vrot.slane %v1164, 5
        %vm1180 = vcmask 1043459
        %v1181 = vsel %vm1180, %v1179, %v1178
        %vm1182 = vcmask 1047559
        %v1183 = vsel %vm1182, %v1179, %v1181
        %vm1185 = vcmask 519168
        %1186 = vst.msk [vmem:[#allocation3] sm:$0xf] %vm1185, %v1183
        %v1187 = vrot.slane %v1161, 1
        %v1188 = vsel %vm1170, %v1162, %v1187
        %v1189 = vsel %vm1172, %v1162, %v1188
        %v1190 = vrot.slane %v1163, 7
        %v1191 = vsel %vm1175, %v1190, %v1189
        %v1192 = vsel %vm1177, %v1190, %v1191
        %v1193 = vrot.slane %v1164, 6
        %v1194 = vsel %vm1180, %v1193, %v1192
        %v1195 = vsel %vm1182, %v1193, %v1194
        %1196 = vrot.lane.b32.xlu0 %v1195, 64
        %v1197 = vpop.permute.xlu0 %1196
        %vm1199 = vcmask 1043968
        %1200 = vst.msk [vmem:[#allocation3] sm:$0xf] %vm1199, %v1197
        %v1201 = vrot.slane %v1161, 2
        %v1202 = vrot.slane %v1162, 1
        %v1203 = vsel %vm1170, %v1202, %v1201
        %v1204 = vsel %vm1172, %v1202, %v1203
        %v1205 = vsel %vm1175, %v1163, %v1204
        %v1206 = vsel %vm1177, %v1163, %v1205
        %v1207 = vrot.slane %v1164, 7
        %v1208 = vsel %vm1180, %v1207, %v1206
        %v1209 = vsel %vm1182, %v1207, %v1208
        %1211 = vst.msk [vmem:[#allocation3 + $0x4] sm:$0xf] %vm1185, %v1209
        %v1212 = vrot.slane %v1161, 3
        %v1213 = vrot.slane %v1162, 2
        %v1214 = vsel %vm1170, %v1213, %v1212
        %v1215 = vsel %vm1172, %v1213, %v1214
        %v1216 = vrot.slane %v1163, 1
        %v1217 = vsel %vm1175, %v1216, %v1215
        %v1218 = vsel %vm1177, %v1216, %v1217
        %v1219 = vsel %vm1180, %v1164, %v1218
        %v1220 = vsel %vm1182, %v1164, %v1219
        %1221 = vrot.lane.b32.xlu0 %v1220, 64
        %v1222 = vpop.permute.xlu0 %1221
        %1224 = vst.msk [vmem:[#allocation3 + $0x4] sm:$0xf] %vm1199, %v1222
        %v1225 = vcombine.high %v1161, %v1161
        %v1226 = vcombine.high %v1162, %v1162
        %v1227 = vcombine.high %v1163, %v1163
        %v1228 = vcombine.high %v1164, %v1164
        %v1229 = vrot.slane %v1226, 7
        %v1230 = vsel %vm1170, %v1229, %v1225
        %v1231 = vsel %vm1172, %v1229, %v1230
        %v1232 = vrot.slane %v1227, 6
        %v1233 = vsel %vm1175, %v1232, %v1231
        %v1234 = vsel %vm1177, %v1232, %v1233
        %v1235 = vrot.slane %v1228, 5
        %v1236 = vsel %vm1180, %v1235, %v1234
        %v1237 = vsel %vm1182, %v1235, %v1236
        %1239 = vst.msk [vmem:[#allocation3 + $0x8] sm:$0xf] %vm1185, %v1237
        %v1240 = vrot.slane %v1225, 1
        %v1241 = vsel %vm1170, %v1226, %v1240
        %v1242 = vsel %vm1172, %v1226, %v1241
        %v1243 = vrot.slane %v1227, 7
        %v1244 = vsel %vm1175, %v1243, %v1242
        %v1245 = vsel %vm1177, %v1243, %v1244
        %v1246 = vrot.slane %v1228, 6
        %v1247 = vsel %vm1180, %v1246, %v1245
        %v1248 = vsel %vm1182, %v1246, %v1247
        %1249 = vrot.lane.b32.xlu0 %v1248, 64
        %v1250 = vpop.permute.xlu0 %1249
        %1252 = vst.msk [vmem:[#allocation3 + $0x8] sm:$0xf] %vm1199, %v1250
        %v1253 = vrot.slane %v1225, 2
        %v1254 = vrot.slane %v1226, 1
        %v1255 = vsel %vm1170, %v1254, %v1253
        %v1256 = vsel %vm1172, %v1254, %v1255
        %v1257 = vsel %vm1175, %v1227, %v1256
        %v1258 = vsel %vm1177, %v1227, %v1257
        %v1259 = vrot.slane %v1228, 7
        %v1260 = vsel %vm1180, %v1259, %v1258
        %v1261 = vsel %vm1182, %v1259, %v1260
        %1263 = vst.msk [vmem:[#allocation3 + $0xc] sm:$0xf] %vm1185, %v1261
        %v1264 = vrot.slane %v1225, 3
        %v1265 = vrot.slane %v1226, 2
        %v1266 = vsel %vm1170, %v1265, %v1264
        %v1267 = vsel %vm1172, %v1265, %v1266
        %v1268 = vrot.slane %v1227, 1
        %v1269 = vsel %vm1175, %v1268, %v1267
        %v1270 = vsel %vm1177, %v1268, %v1269
        %v1271 = vsel %vm1180, %v1228, %v1270
        %v1272 = vsel %vm1182, %v1228, %v1271
        %1273 = vrot.lane.b32.xlu0 %v1272, 64
        %v1274 = vpop.permute.xlu0 %1273
        %1276 = vst.msk [vmem:[#allocation3 + $0xc] sm:$0xf] %vm1199, %v1274
        %v1277 = vld [vmem:[#allocation3] sm:$0xff]
        %v1278 = vld [vmem:[#allocation3 + $0x8] sm:$0xff]
        %v1279 = vld [vmem:[%s5] sm:$0xff]
        %v1280 = vld [vmem:[%s5 + $0x8] sm:$0xff]
        %v1281 = vld [vmem:[%s5 + $0x10] sm:$0xff]
        %v1282 = vld [vmem:[%s5 + $0x18] sm:$0xff]
        %v1283 = vld [vmem:[%s5 + $0x20] sm:$0xff]
        %v1284 = vld [vmem:[%s5 + $0x28] sm:$0xff]
        %v1285 = vld [vmem:[%s5 + $0x30] sm:$0xff]
        %v1286 = vld [vmem:[%s5 + $0x38] sm:$0xff]
        %v1287 = vld [vmem:[%s5 + $0x40] sm:$0xff]
        %v1288 = vld [vmem:[%s5 + $0x48] sm:$0xff]
        %v1289 = vld [vmem:[%s5 + $0x50] sm:$0xff]
        %v1290 = vld [vmem:[%s5 + $0x58] sm:$0xff]
        %v1291 = vld [vmem:[%s5 + $0x60] sm:$0xff]
        %v1292 = vld [vmem:[%s5 + $0x68] sm:$0xff]
        %v1293 = vld [vmem:[%s5 + $0x70] sm:$0xff]
        %v1294 = vld [vmem:[%s5 + $0x78] sm:$0xff]
        %v1295 = vld [vmem:[%s5 + $0x80] sm:$0xff]
        %v1296 = vld [vmem:[%s5 + $0x88] sm:$0xff]
        %v1297 = vld [vmem:[%s5 + $0x90] sm:$0xff]
        %v1298 = vld [vmem:[%s5 + $0x98] sm:$0xff]
        %v1299 = vld [vmem:[%s5 + $0xa0] sm:$0xff]
        %v1300 = vld [vmem:[%s5 + $0xa8] sm:$0xff]
        %v1301 = vld [vmem:[%s5 + $0xb0] sm:$0xff]
        %v1302 = vld [vmem:[%s5 + $0xb8] sm:$0xff]
        %v1303 = vld [vmem:[%s5 + $0xc0] sm:$0xff]
        %v1304 = vld [vmem:[%s5 + $0xc8] sm:$0xff]
        %v1305 = vld [vmem:[%s5 + $0xd0] sm:$0xff]
        %v1306 = vld [vmem:[%s5 + $0xd8] sm:$0xff]
        %v1307 = vld [vmem:[%s5 + $0xe0] sm:$0xff]
        %v1308 = vld [vmem:[%s5 + $0xe8] sm:$0xff]
        %v1309 = vld [vmem:[%s5 + $0xf0] sm:$0xff]
        %v1310 = vld [vmem:[%s5 + $0xf8] sm:$0xff]
        %v1311 = vld [vmem:[%s5 + $0x100] sm:$0xff]
        %v1312 = vld [vmem:[%s5 + $0x108] sm:$0xff]
        %v1313 = vld [vmem:[%s5 + $0x110] sm:$0xff]
        %v1314 = vld [vmem:[%s5 + $0x118] sm:$0xff]
        %v1315 = vld [vmem:[%s5 + $0x120] sm:$0xff]
        %v1316 = vld [vmem:[%s5 + $0x128] sm:$0xff]
        %v1317 = vld [vmem:[%s5 + $0x130] sm:$0xff]
        %v1318 = vld [vmem:[%s5 + $0x138] sm:$0xff]
        %v1319 = vld [vmem:[%s5 + $0x140] sm:$0xff]
        %v1320 = vld [vmem:[%s5 + $0x148] sm:$0xff]
        %v1321 = vld [vmem:[%s5 + $0x150] sm:$0xff]
        %v1322 = vld [vmem:[%s5 + $0x158] sm:$0xff]
        %v1323 = vld [vmem:[%s5 + $0x160] sm:$0xff]
        %v1324 = vld [vmem:[%s5 + $0x168] sm:$0xff]
        %v1325 = vld [vmem:[%s5 + $0x170] sm:$0xff]
        %v1326 = vld [vmem:[%s5 + $0x178] sm:$0xff]
        %v1327 = vld [vmem:[%s5 + $0x180] sm:$0xff]
        %v1328 = vld [vmem:[%s5 + $0x188] sm:$0xff]
        %v1329 = vld [vmem:[%s5 + $0x190] sm:$0xff]
        %v1330 = vld [vmem:[%s5 + $0x198] sm:$0xff]
        %v1331 = vld [vmem:[%s5 + $0x1a0] sm:$0xff]
        %v1332 = vld [vmem:[%s5 + $0x1a8] sm:$0xff]
        %v1333 = vld [vmem:[%s5 + $0x1b0] sm:$0xff]
        %v1334 = vld [vmem:[%s5 + $0x1b8] sm:$0xff]
        %v1335 = vld [vmem:[%s5 + $0x1c0] sm:$0xff]
        %v1336 = vld [vmem:[%s5 + $0x1c8] sm:$0xff]
        %v1337 = vld [vmem:[%s5 + $0x1d0] sm:$0xff]
        %v1338 = vld [vmem:[%s5 + $0x1d8] sm:$0xff]
        %v1339 = vld [vmem:[%s5 + $0x1e0] sm:$0xff]
        %v1340 = vld [vmem:[%s5 + $0x1e8] sm:$0xff]
        %v1341 = vld [vmem:[%s5 + $0x1f0] sm:$0xff]
        %v1342 = vld [vmem:[%s5 + $0x1f8] sm:$0xff]
        %v1343 = vld [vmem:[%s6] sm:$0x1]
        %v1345 = vlaneseq
        %v1346 = vshrl.u32 %v1345, 7
        %v1347 = vsub.s32 0, %v1346
        %v1348 = vrot.slane %v1343, %v1347
        %v1352 = vcombine.high %v1277, %v1277
        %v1353 = vcombine.high %v1278, %v1278
        %1356 = vmatprep.subr.mxu0 0.0
        %1357 = vmatpush1.msra.mxu0 %v1279
        %1358 = vmatprep.subr.mxu0 0.0
        %1359 = vmatpush1.msra.mxu0 %v1280
        %1360 = vmatprep.subr.mxu0 0.0
        %1361 = vmatpush1.msra.mxu0 %v1281
        %1362 = vmatprep.subr.mxu0 0.0
        %1363 = vmatpush1.msra.mxu0 %v1282
        %1364 = vmatprep.subr.mxu0 0.0
        %1365 = vmatpush1.msra.mxu0 %v1283
        %1366 = vmatprep.subr.mxu0 0.0
        %1367 = vmatpush1.msra.mxu0 %v1284
        %1368 = vmatprep.subr.mxu0 0.0
        %1369 = vmatpush1.msra.mxu0 %v1285
        %1370 = vmatprep.subr.mxu0 0.0
        %1371 = vmatpush1.msra.mxu0 %v1286
        %1372 = vmatprep.subr.mxu0 0.0
        %1373 = vmatpush1.msra.mxu0 %v1287
        %1374 = vmatprep.subr.mxu0 0.0
        %1375 = vmatpush1.msra.mxu0 %v1288
        %1376 = vmatprep.subr.mxu0 0.0
        %1377 = vmatpush1.msra.mxu0 %v1289
        %1378 = vmatprep.subr.mxu0 0.0
        %1379 = vmatpush1.msra.mxu0 %v1290
        %1380 = vmatprep.subr.mxu0 0.0
        %1381 = vmatpush1.msra.mxu0 %v1291
        %1382 = vmatprep.subr.mxu0 0.0
        %1383 = vmatpush1.msra.mxu0 %v1292
        %1384 = vmatprep.subr.mxu0 0.0
        %1385 = vmatpush1.msra.mxu0 %v1293
        %1386 = vmatprep.subr.mxu0 0.0
        %1387 = vmatpush1.msra.mxu0 %v1294
        %1388 = vmatprep.subr.mxu0 0.0
        %1389 = vmatpush1.msra.mxu0 %v1295
        %1390 = vmatprep.subr.mxu0 0.0
        %1391 = vmatpush1.msra.mxu0 %v1296
        %1392 = vmatprep.subr.mxu0 0.0
        %1393 = vmatpush1.msra.mxu0 %v1297
        %1394 = vmatprep.subr.mxu0 0.0
        %1395 = vmatpush1.msra.mxu0 %v1298
        %1396 = vmatprep.subr.mxu0 0.0
        %1397 = vmatpush1.msra.mxu0 %v1299
        %1398 = vmatprep.subr.mxu0 0.0
        %1399 = vmatpush1.msra.mxu0 %v1300
        %1400 = vmatprep.subr.mxu0 0.0
        %1401 = vmatpush1.msra.mxu0 %v1301
        %1402 = vmatprep.subr.mxu0 0.0
        %1403 = vmatpush1.msra.mxu0 %v1302
        %1404 = vmatprep.subr.mxu0 0.0
        %1405 = vmatpush1.msra.mxu0 %v1303
        %1406 = vmatprep.subr.mxu0 0.0
        %1407 = vmatpush1.msra.mxu0 %v1304
        %1408 = vmatprep.subr.mxu0 0.0
        %1409 = vmatpush1.msra.mxu0 %v1305
        %1410 = vmatprep.subr.mxu0 0.0
        %1411 = vmatpush1.msra.mxu0 %v1306
        %1412 = vmatprep.subr.mxu0 0.0
        %1413 = vmatpush1.msra.mxu0 %v1307
        %1414 = vmatprep.subr.mxu0 0.0
        %1415 = vmatpush1.msra.mxu0 %v1308
        %1416 = vmatprep.subr.mxu0 0.0
        %1417 = vmatpush1.msra.mxu0 %v1309
        %1418 = vmatprep.subr.mxu0 0.0
        %1419 = vmatpush1.msra.mxu0 %v1310
        %1420 = vmatprep.mubr.f32.mxu0 %v1352
        %1421 = vmatmul.mubr.f32.gmra.mrb[0].mxu0 %v1277
        %v1422 = vpop.f32.mrb[0].mxu0
        %v1423 = vadd.f32 %v1348, %v1422
        %v1424 = vpop.f32.mrb[0].mxu0
        %1425 = vdwg.mxu0
        %1426 = vmatprep.subr.mxu0 0.0
        %1427 = vmatpush1.msra.mxu0 %v1311
        %1428 = vmatprep.subr.mxu0 0.0
        %1429 = vmatpush1.msra.mxu0 %v1312
        %1430 = vmatprep.subr.mxu0 0.0
        %1431 = vmatpush1.msra.mxu0 %v1313
        %1432 = vmatprep.subr.mxu0 0.0
        %1433 = vmatpush1.msra.mxu0 %v1314
        %1434 = vmatprep.subr.mxu0 0.0
        %1435 = vmatpush1.msra.mxu0 %v1315
        %1436 = vmatprep.subr.mxu0 0.0
        %1437 = vmatpush1.msra.mxu0 %v1316
        %1438 = vmatprep.subr.mxu0 0.0
        %1439 = vmatpush1.msra.mxu0 %v1317
        %1440 = vmatprep.subr.mxu0 0.0
        %1441 = vmatpush1.msra.mxu0 %v1318
        %1442 = vmatprep.subr.mxu0 0.0
        %1443 = vmatpush1.msra.mxu0 %v1319
        %1444 = vmatprep.subr.mxu0 0.0
        %1445 = vmatpush1.msra.mxu0 %v1320
        %1446 = vmatprep.subr.mxu0 0.0
        %1447 = vmatpush1.msra.mxu0 %v1321
        %1448 = vmatprep.subr.mxu0 0.0
        %1449 = vmatpush1.msra.mxu0 %v1322
        %1450 = vmatprep.subr.mxu0 0.0
        %1451 = vmatpush1.msra.mxu0 %v1323
        %1452 = vmatprep.subr.mxu0 0.0
        %1453 = vmatpush1.msra.mxu0 %v1324
        %1454 = vmatprep.subr.mxu0 0.0
        %1455 = vmatpush1.msra.mxu0 %v1325
        %1456 = vmatprep.subr.mxu0 0.0
        %1457 = vmatpush1.msra.mxu0 %v1326
        %1458 = vmatprep.subr.mxu0 0.0
        %1459 = vmatpush1.msra.mxu0 %v1327
        %1460 = vmatprep.subr.mxu0 0.0
        %1461 = vmatpush1.msra.mxu0 %v1328
        %1462 = vmatprep.subr.mxu0 0.0
        %1463 = vmatpush1.msra.mxu0 %v1329
        %1464 = vmatprep.subr.mxu0 0.0
        %1465 = vmatpush1.msra.mxu0 %v1330
        %1466 = vmatprep.subr.mxu0 0.0
        %1467 = vmatpush1.msra.mxu0 %v1331
        %1468 = vmatprep.subr.mxu0 0.0
        %1469 = vmatpush1.msra.mxu0 %v1332
        %1470 = vmatprep.subr.mxu0 0.0
        %1471 = vmatpush1.msra.mxu0 %v1333
        %1472 = vmatprep.subr.mxu0 0.0
        %1473 = vmatpush1.msra.mxu0 %v1334
        %1474 = vmatprep.subr.mxu0 0.0
        %1475 = vmatpush1.msra.mxu0 %v1335
        %1476 = vmatprep.subr.mxu0 0.0
        %1477 = vmatpush1.msra.mxu0 %v1336
        %1478 = vmatprep.subr.mxu0 0.0
        %1479 = vmatpush1.msra.mxu0 %v1337
        %1480 = vmatprep.subr.mxu0 0.0
        %1481 = vmatpush1.msra.mxu0 %v1338
        %1482 = vmatprep.subr.mxu0 0.0
        %1483 = vmatpush1.msra.mxu0 %v1339
        %1484 = vmatprep.subr.mxu0 0.0
        %1485 = vmatpush1.msra.mxu0 %v1340
        %1486 = vmatprep.subr.mxu0 0.0
        %1487 = vmatpush1.msra.mxu0 %v1341
        %1488 = vmatprep.subr.mxu0 0.0
        %1489 = vmatpush1.msra.mxu0 %v1342
        %1490 = vmatprep.mubr.f32.mxu0 %v1353
        %1491 = vmatmul.mubr.f32.gmra.mrb[0].mxu0 %v1278
        %v1492 = vpop.f32.mrb[0].mxu0
        %v1493 = vadd.f32 %v1423, %v1492
        %v1494 = vpop.f32.mrb[0].mxu0
        %1495 = vdwg.mxu0
        %v1496 = vtanh.pop %v1493
        %v1497 = vld [vmem:[%s7] sm:$0xff]
        %v1498 = vld [vmem:[%s7 + $0x8] sm:$0xff]
        %v1499 = vld [vmem:[%s7 + $0x10] sm:$0xff]
        %v1500 = vld [vmem:[%s7 + $0x18] sm:$0xff]
        %v1501 = vld [vmem:[%s8] sm:$0x1]
        %v1503 = vlaneseq
        %v1504 = vshrl.u32 %v1503, 7
        %v1505 = vsub.s32 0, %v1504
        %v1506 = vrot.slane %v1501, %v1505
        %vm1508 = vcmask 261120
        %v1510 = vsel %vm1508, %v1496, 0
        %1512 = vmatprep.subr.mxu0 0.0
        %1513 = vmatpush1.msra.mxu0 %v1497
        %1514 = vmatprep.subr.mxu0 0.0
        %1515 = vmatpush1.msra.mxu0 %v1498
        %1516 = vmatprep.subr.mxu0 0.0
        %1517 = vmatpush1.msra.mxu0 %v1499
        %1518 = vmatprep.subr.mxu0 0.0
        %1519 = vmatpush1.msra.mxu0 %v1500
        %1520 = vmatprep.subr.mxu0 0.0
        %1521 = vmatpush1.msra.mxu0 0.0
        %1522 = vmatprep.subr.mxu0 0.0
        %1523 = vmatpush1.msra.mxu0 0.0
        %1524 = vmatprep.subr.mxu0 0.0
        %1525 = vmatpush1.msra.mxu0 0.0
        %1526 = vmatprep.subr.mxu0 0.0
        %1527 = vmatpush1.msra.mxu0 0.0
        %1528 = vmatprep.subr.mxu0 0.0
        %1529 = vmatpush1.msra.mxu0 0.0
        %1530 = vmatprep.subr.mxu0 0.0
        %1531 = vmatpush1.msra.mxu0 0.0
        %1532 = vmatprep.subr.mxu0 0.0
        %1533 = vmatpush1.msra.mxu0 0.0
        %1534 = vmatprep.subr.mxu0 0.0
        %1535 = vmatpush1.msra.mxu0 0.0
        %1536 = vmatprep.subr.mxu0 0.0
        %1537 = vmatpush1.msra.mxu0 0.0
        %1538 = vmatprep.subr.mxu0 0.0
        %1539 = vmatpush1.msra.mxu0 0.0
        %1540 = vmatprep.subr.mxu0 0.0
        %1541 = vmatpush1.msra.mxu0 0.0
        %1542 = vmatprep.subr.mxu0 0.0
        %1543 = vmatpush1.msra.mxu0 0.0
        %1544 = vmatprep.subr.mxu0 0.0
        %1545 = vmatpush1.msra.mxu0 0.0
        %1546 = vmatprep.subr.mxu0 0.0
        %1547 = vmatpush1.msra.mxu0 0.0
        %1548 = vmatprep.subr.mxu0 0.0
        %1549 = vmatpush1.msra.mxu0 0.0
        %1550 = vmatprep.subr.mxu0 0.0
        %1551 = vmatpush1.msra.mxu0 0.0
        %1552 = vmatprep.subr.mxu0 0.0
        %1553 = vmatpush1.msra.mxu0 0.0
        %1554 = vmatprep.subr.mxu0 0.0
        %1555 = vmatpush1.msra.mxu0 0.0
        %1556 = vmatprep.subr.mxu0 0.0
        %1557 = vmatpush1.msra.mxu0 0.0
        %1558 = vmatprep.subr.mxu0 0.0
        %1559 = vmatpush1.msra.mxu0 0.0
        %1560 = vmatprep.subr.mxu0 0.0
        %1561 = vmatpush1.msra.mxu0 0.0
        %1562 = vmatprep.subr.mxu0 0.0
        %1563 = vmatpush1.msra.mxu0 0.0
        %1564 = vmatprep.subr.mxu0 0.0
        %1565 = vmatpush1.msra.mxu0 0.0
        %1566 = vmatprep.subr.mxu0 0.0
        %1567 = vmatpush1.msra.mxu0 0.0
        %1568 = vmatprep.subr.mxu0 0.0
        %1569 = vmatpush1.msra.mxu0 0.0
        %1570 = vmatprep.subr.mxu0 0.0
        %1571 = vmatpush1.msra.mxu0 0.0
        %1572 = vmatprep.subr.mxu0 0.0
        %1573 = vmatpush1.msra.mxu0 0.0
        %1574 = vmatprep.subr.mxu0 0.0
        %1575 = vmatpush1.msra.mxu0 0.0
        %1576 = vmatprep.mubr.f32.mxu0 0.0
        %1577 = vmatmul.mubr.f32.gmra.mrb[0].mxu0 %v1510
        %v1578 = vpop.f32.mrb[0].mxu0
        %v1579 = vadd.f32 %v1506, %v1578
        %v1580 = vpop.f32.mrb[0].mxu0
        %1581 = vdwg.mxu0
        %v1582 = vtanh.pop %v1579
        %v1583 = vld [vmem:[%s9] sm:$0xff]
        %v1584 = vld [vmem:[%s9 + $0x8] sm:$0xff]
        %v1585 = vld [vmem:[%s9 + $0x10] sm:$0xff]
        %v1586 = vld [vmem:[%s9 + $0x18] sm:$0xff]
        %v1587 = vld [vmem:[%s10] sm:$0x1]
        %v1589 = vlaneseq
        %v1590 = vshrl.u32 %v1589, 7
        %v1591 = vsub.s32 0, %v1590
        %v1592 = vrot.slane %v1587, %v1591
        %v1595 = vsel %vm1508, %v1582, 0
        %1597 = vmatprep.subr.mxu0 0.0
        %1598 = vmatpush1.msra.mxu0 %v1583
        %1599 = vmatprep.subr.mxu0 0.0
        %1600 = vmatpush1.msra.mxu0 %v1584
        %1601 = vmatprep.subr.mxu0 0.0
        %1602 = vmatpush1.msra.mxu0 %v1585
        %1603 = vmatprep.subr.mxu0 0.0
        %1604 = vmatpush1.msra.mxu0 %v1586
        %1605 = vmatprep.subr.mxu0 0.0
        %1606 = vmatpush1.msra.mxu0 0.0
        %1607 = vmatprep.subr.mxu0 0.0
        %1608 = vmatpush1.msra.mxu0 0.0
        %1609 = vmatprep.subr.mxu0 0.0
        %1610 = vmatpush1.msra.mxu0 0.0
        %1611 = vmatprep.subr.mxu0 0.0
        %1612 = vmatpush1.msra.mxu0 0.0
        %1613 = vmatprep.subr.mxu0 0.0
        %1614 = vmatpush1.msra.mxu0 0.0
        %1615 = vmatprep.subr.mxu0 0.0
        %1616 = vmatpush1.msra.mxu0 0.0
        %1617 = vmatprep.subr.mxu0 0.0
        %1618 = vmatpush1.msra.mxu0 0.0
        %1619 = vmatprep.subr.mxu0 0.0
        %1620 = vmatpush1.msra.mxu0 0.0
        %1621 = vmatprep.subr.mxu0 0.0
        %1622 = vmatpush1.msra.mxu0 0.0
        %1623 = vmatprep.subr.mxu0 0.0
        %1624 = vmatpush1.msra.mxu0 0.0
        %1625 = vmatprep.subr.mxu0 0.0
        %1626 = vmatpush1.msra.mxu0 0.0
        %1627 = vmatprep.subr.mxu0 0.0
        %1628 = vmatpush1.msra.mxu0 0.0
        %1629 = vmatprep.subr.mxu0 0.0
        %1630 = vmatpush1.msra.mxu0 0.0
        %1631 = vmatprep.subr.mxu0 0.0
        %1632 = vmatpush1.msra.mxu0 0.0
        %1633 = vmatprep.subr.mxu0 0.0
        %1634 = vmatpush1.msra.mxu0 0.0
        %1635 = vmatprep.subr.mxu0 0.0
        %1636 = vmatpush1.msra.mxu0 0.0
        %1637 = vmatprep.subr.mxu0 0.0
        %1638 = vmatpush1.msra.mxu0 0.0
        %1639 = vmatprep.subr.mxu0 0.0
        %1640 = vmatpush1.msra.mxu0 0.0
        %1641 = vmatprep.subr.mxu0 0.0
        %1642 = vmatpush1.msra.mxu0 0.0
        %1643 = vmatprep.subr.mxu0 0.0
        %1644 = vmatpush1.msra.mxu0 0.0
        %1645 = vmatprep.subr.mxu0 0.0
        %1646 = vmatpush1.msra.mxu0 0.0
        %1647 = vmatprep.subr.mxu0 0.0
        %1648 = vmatpush1.msra.mxu0 0.0
        %1649 = vmatprep.subr.mxu0 0.0
        %1650 = vmatpush1.msra.mxu0 0.0
        %1651 = vmatprep.subr.mxu0 0.0
        %1652 = vmatpush1.msra.mxu0 0.0
        %1653 = vmatprep.subr.mxu0 0.0
        %1654 = vmatpush1.msra.mxu0 0.0
        %1655 = vmatprep.subr.mxu0 0.0
        %1656 = vmatpush1.msra.mxu0 0.0
        %1657 = vmatprep.subr.mxu0 0.0
        %1658 = vmatpush1.msra.mxu0 0.0
        %1659 = vmatprep.subr.mxu0 0.0
        %1660 = vmatpush1.msra.mxu0 0.0
        %1661 = vmatprep.mubr.f32.mxu0 0.0
        %1662 = vmatmul.mubr.f32.gmra.mrb[0].mxu0 %v1595
        %v1663 = vpop.f32.mrb[0].mxu0
        %v1664 = vadd.f32 %v1592, %v1663
        %v1665 = vpop.f32.mrb[0].mxu0
        %1666 = vdwg.mxu0
        %v1667 = vtanh.pop %v1664
        %v1668 = vmul.f32 %v1667, 3.1415927
        %1669 = vst [vmem:[%s379] sm:$0xf] %v1668
        %s1670 = sand.u32 %s269, 1
        %s1671 = scalar_lea.sflag [#allocation5], %s1670
        %s1672 = sand.u32 %s269, 1
        %s1673 = smul.addr %s1672, 4
        %s1674 = scalar_lea.vmem [#allocation4], %s1673
        // Predicated region
        $region65: #{tpu_custom_call.1} parent=63 // pred_check
          %p1675 = pneg %p279
        $region66: #{tpu_custom_call.1} parent=63 // pred_check_branch
          %1677 = sbr.rel (%p1675) target = $region68
        $region67: #{tpu_custom_call.1} parent=63 // pred_region
          %s1679 = ssub.s32 64, 64
          %1680 = vsyncadd %s1671, %s1679
          %s1681 = smul.addr %s25, 64
          %s1682 = scalar_lea.hbm %s11, %s1681
          %s1684 = sshll.u32 %s1674, 4
          %s1685 = int_to_ptr.vmem [resolvable:$true] %s1684
          %1687 = dma.vmem_to_hbm [thread:$0]  %s1685, 64, %s1682, %s1671
        $region68: #{tpu_custom_call.1} parent=63 // pred_fallthru
          _
      $region64: #{tpu_custom_call.1} parent=5 // pred_fallthru
        _
      %p1688 = scmp.le.s32.totalorder 2, %s20
      // Predicated region
      $region69: #{tpu_custom_call.1} parent=5 // pred_check
        %p1689 = pneg %p1688
      $region70: #{tpu_custom_call.1} parent=5 // pred_check_branch
        %1691 = sbr.rel (%p1689) target = $region72
      $region71: #{tpu_custom_call.1} parent=5 // pred_region
        %s1692 = ssub.s32 %s20, 2
        // Predicated region
        $region73: #{tpu_custom_call.1} parent=71 // pred_check
          %p1693 = pneg %p285
        $region74: #{tpu_custom_call.1} parent=71 // pred_check_branch
          %1695 = sbr.rel (%p1693) target = $region76
        $region75: #{tpu_custom_call.1} parent=71 // pred_region
          %s1696 = sand.u32 %s270, 1
          %s1697 = scalar_lea.sflag [#allocation5], %s1696
          %s1698 = sand.u32 %s270, 1
          %s1699 = smul.addr %s1698, 4
          %s1700 = scalar_lea.vmem [#allocation4], %s1699
          %1701 = dma.done %s1697, 64
        $region76: #{tpu_custom_call.1} parent=71 // pred_fallthru
          _
      $region72: #{tpu_custom_call.1} parent=5 // pred_fallthru
        _
    $region6: #{tpu_custom_call.1} parent=1 // loop_footer
      %s24 = sadd.s32 1, %s20
    $region7: #{tpu_custom_call.1} parent=1 // loop_footer_branch
      %19 = sbr.rel target = $region3
    $region8: #{tpu_custom_call.1} parent=1 // loop_exit
      _
    %1702 = vsyncpa [#allocation5], 1
    %s1703 = scalar_lea.sflag [#allocation5], 1
    %1704 = vsyncpa %s1703, 1

</llo_original>
